<compile_context>
chip_gen: v6e
topology: v6e:2x2x1
jax: 0.10.0
libtpu: 0.0.40
codegen_flags: <defaults>
</compile_context>

<pallas_src>
import numpy as np
import jax
import jax.numpy as jnp
from jax.experimental import pallas as pl
from jax.experimental.pallas import tpu as pltpu

D = 768          # BERT hidden size (fixed: the module's LSTM input size is 768)
H = 384          # LSTM hidden size (bidirectional -> 768 out)
S = 128          # (small) document length in tokens
N_HEADS = 12
N_CLASS = 96
E_PAD = 8        # padded entity count per document
B_PAD = 8        # LSTM "batch" rows (4 real feature rows padded to a full sublane)


# ---------------------------- Pallas kernels ----------------------------

def aggregate_kernel(attn_ref, emb_ref, mmask_ref, smask_ref, ctx_ref, doc_ref):
    """aggregate_entities() hot path, batched over documents via grid=(n_docs,).

    Per grid step (one document):
      attn:      (1, S, S)  head-averaged last-layer attention
      emb:       (1, S, D)  last_hidden_state
      mean_mask: (1, E, S)  mention mask pre-scaled by 1/mention-token-count
      sum_mask:  (1, E, S)  raw 0/1 mention mask
      ctx:       (1, E, D)  mean over mention rows of (attention_row @ emb)
      doc:       (1, E, D)  logsumexp over mention-token embeddings
    Matmul operands are cast to bf16 (MXU-native), accumulation stays f32.
    """
    emb_f32 = emb_ref[0]                                   # (S, D) f32
    emb = emb_f32.astype(jnp.bfloat16)
    attn = attn_ref[0].astype(jnp.bfloat16)                # (S, S)
    mean_mask = mmask_ref[0].astype(jnp.bfloat16)          # (E, S)
    sum_mask = smask_ref[0].astype(jnp.bfloat16)           # (E, S)

    # context = mean_rows(attn[mention rows]) @ emb  ==  (mask/cnt) @ attn @ emb
    attn_agg = jnp.dot(mean_mask, attn,
                       preferred_element_type=jnp.float32)               # (E, S)
    ctx_ref[0] = jnp.dot(attn_agg.astype(jnp.bfloat16), emb,
                         preferred_element_type=jnp.float32)             # (E, D)

    # masked logsumexp over tokens, stabilized with the per-column global max.
    m = jnp.max(emb_f32, axis=0, keepdims=True)                          # (1, D)
    expm = jnp.exp((emb_f32 - m).astype(jnp.bfloat16))                   # (S, D) bf16 exp
    sums = jnp.dot(sum_mask, expm, preferred_element_type=jnp.float32)   # (E, D) f32
    # clamp keeps padded (all-zero mask) entity rows finite instead of -inf
    doc_ref[0] = m + jnp.log(jnp.maximum(sums, 1e-30))


def bilstm_layer_kernel(x_ref, wih_ref, whh_ref, b_ref, y_ref, gin_sc, h_sc, c_sc):
    """One bidirectional LSTM layer (both directions fused, PyTorch gate order i,f,g,o).

    x:   (T, B, I)  input sequence
    wih: (I, 8H)    [forward 4H | backward 4H] input weights (bf16)
    whh: (H, 8H)    [forward 4H | backward 4H] recurrent weights (bf16)
    b:   (1, 8H)    combined biases (f32)
    y:   (T, B, 2H) [forward H | backward H] outputs

    The input projection for BOTH directions and ALL timesteps is hoisted out of the
    recurrent loop into a single (T*B, I) @ (I, 8H) matmul; only the (2B, H) @ (H, 8H)
    recurrent matmul remains inside the step.
    """
    T, B, I = x_ref.shape
    Hh = h_sc.shape[-1]
    G = 4 * Hh

    # --- hoisted input projection (one well-shaped MXU call) ---
    x_flat = x_ref[...].reshape(T * B, I).astype(jnp.bfloat16)
    gin = jnp.dot(x_flat, wih_ref[...], preferred_element_type=jnp.float32) + b_ref[...]
    gin_sc[...] = gin.reshape(T, B, 2 * G)

    # state rows 0:B = forward direction, rows B:2B = backward direction
    h_sc[...] = jnp.zeros_like(h_sc)
    c_sc[...] = jnp.zeros_like(c_sc)

    def step(t, carry):
        tb = T - 1 - t
        # one stacked recurrent matmul, M = 2B (full sublanes)
        gr = jnp.dot(h_sc[...].astype(jnp.bfloat16), whh_ref[...],
                     preferred_element_type=jnp.float32)                 # (2B, 2G)
        g_f = gin_sc[t, :, 0:G] + gr[:B, 0:G]                            # (B, G)
        g_b = gin_sc[tb, :, G:2 * G] + gr[B:, G:2 * G]                   # (B, G)
        gates = jnp.concatenate([g_f, g_b], axis=0)                      # (2B, G)
        i_g = jax.nn.sigmoid(gates[:, 0 * Hh:1 * Hh])
        f_g = jax.nn.sigmoid(gates[:, 1 * Hh:2 * Hh])
        g_g = jnp.tanh(gates[:, 2 * Hh:3 * Hh])
        o_g = jax.nn.sigmoid(gates[:, 3 * Hh:4 * Hh])
        c_new = f_g * c_sc[...] + i_g * g_g
        h_new = o_g * jnp.tanh(c_new)
        c_sc[...] = c_new
        h_sc[...] = h_new
        # write both halves straight into the (T, B, 2H) output (no host flip/concat)
        y_ref[t, :, 0:Hh] = h_new[:B, :]
        y_ref[tb, :, Hh:2 * Hh] = h_new[B:, :]
        return carry

    jax.lax.fori_loop(0, T, step, 0)


# ---------------------------- Wrappers ----------------------------

def aggregate_entities_pallas(attn, emb, mean_mask, sum_mask):
    n_docs, E, _ = mean_mask.shape
    return pl.pallas_call(
        aggregate_kernel,
        out_shape=(jax.ShapeDtypeStruct((n_docs, E, D), jnp.float32),
                   jax.ShapeDtypeStruct((n_docs, E, D), jnp.float32)),
        grid=(n_docs,),
        in_specs=[pl.BlockSpec((1, S, S), lambda d: (d, 0, 0)),
                  pl.BlockSpec((1, S, D), lambda d: (d, 0, 0)),
                  pl.BlockSpec((1, E, S), lambda d: (d, 0, 0)),
                  pl.BlockSpec((1, E, S), lambda d: (d, 0, 0))],
        out_specs=(pl.BlockSpec((1, E, D), lambda d: (d, 0, 0)),
                   pl.BlockSpec((1, E, D), lambda d: (d, 0, 0))),
        compiler_params=pltpu.CompilerParams(dimension_semantics=("parallel",)),
    )(attn, emb, mean_mask, sum_mask)


def bilstm_layer(x, w_ih, w_hh, b):
    T, B, I = x.shape
    return pl.pallas_call(
        bilstm_layer_kernel,
        out_shape=jax.ShapeDtypeStruct((T, B, 2 * H), jnp.float32),
        grid=(1,),
        in_specs=[pl.BlockSpec((T, B, I), lambda i: (0, 0, 0)),
                  pl.BlockSpec((I, 8 * H), lambda i: (0, 0)),
                  pl.BlockSpec((H, 8 * H), lambda i: (0, 0)),
                  pl.BlockSpec((1, 8 * H), lambda i: (0, 0))],
        out_specs=pl.BlockSpec((T, B, 2 * H), lambda i: (0, 0, 0)),
        scratch_shapes=[pltpu.VMEM((T, B, 8 * H), jnp.float32),   # hoisted input gates
                        pltpu.VMEM((2 * B, H), jnp.float32),      # h (fwd rows + bwd rows)
                        pltpu.VMEM((2 * B, H), jnp.float32)],     # c
        compiler_params=pltpu.CompilerParams(dimension_semantics=("arbitrary",)),
    )(x, w_ih, w_hh, b)


def bilstm_2layer(x, params):
    # params: per layer, (w_ih (I,8H) bf16, w_hh (H,8H) bf16, b (1,8H) f32)
    out = x
    for (w_ih, w_hh, b) in params:
        out = bilstm_layer(out, w_ih, w_hh, b)
    return out


def init_lstm_params(key):
    k = 1.0 / np.sqrt(H)
    params = []
    for in_size in (D, 2 * H):          # layer 0 input 768, layer 1 input 2*384
        key, k1, k2, k3, k4 = jax.random.split(key, 5)
        # columns [0:4H] = forward direction, [4H:8H] = backward direction
        w_ih = jax.random.uniform(k1, (in_size, 8 * H), jnp.float32, -k, k)
        w_hh = jax.random.uniform(k2, (H, 8 * H), jnp.float32, -k, k)
        b_ih = jax.random.uniform(k3, (1, 8 * H), jnp.float32, -k, k)
        b_hh = jax.random.uniform(k4, (1, 8 * H), jnp.float32, -k, k)
        params.append((w_ih.astype(jnp.bfloat16),
                       w_hh.astype(jnp.bfloat16),
                       b_ih + b_hh))
    return params


# ---------------------------- Driver ----------------------------

if __name__ == "__main__":
    key = jax.random.PRNGKey(0)
    key, k_emb, k_attn, k_lstm = jax.random.split(key, 4)

    n_docs = 2
    # TODO(synk): the pretrained `ppb.BertModel` encoder cannot be reproduced here; its outputs
    # (last_hidden_state + last-layer attentions) are synthesized deterministically instead.
    last_hidden = jax.random.normal(k_emb, (n_docs, S, D), jnp.float32)
    attn_logits = jax.random.normal(k_attn, (n_docs, N_HEADS, S, S), jnp.float32)
    attentions_last = jax.nn.softmax(attn_logits, axis=-1)
    last_attention_lr = jnp.mean(attentions_last, axis=1)       # mean over heads (glue)

    # entity mention spans per document: per entity, list of (start, end) token positions
    entity_list = [
        [[(2, 5), (40, 42)], [(10, 12)], [(60, 64)]],
        [[(1, 3)], [(20, 25), (70, 72)], [(90, 95)]],
    ]
    # relation labels: only specific (head, tail) pairs are positive (sparse, deterministic)
    pos_pairs = [[(0, 1), (1, 2)], [(2, 0), (0, 2), (1, 0)]]
    labels_np = np.zeros((n_docs, E_PAD, E_PAD, N_CLASS), dtype=np.float32)
    for di, pairs in enumerate(pos_pairs):
        for (h, t) in pairs:
            labels_np[di, h, t, (h * 7 + t) % N_CLASS] = 1.0

    # --- build mention masks for all docs on host; fold 1/count into the mean mask ---
    sum_mask_np = np.zeros((n_docs, E_PAD, S), dtype=np.float32)
    for di, ents in enumerate(entity_list):
        for ei, mentions in enumerate(ents):
            for (p0, p1) in mentions:
                sum_mask_np[di, ei, p0 + 1:p1 + 1] = 1.0         # matches [pos0+1 : pos1+1]
    counts = np.maximum(sum_mask_np.sum(axis=2, keepdims=True), 1.0)
    mean_mask_np = (sum_mask_np / counts).astype(np.float32)

    # one batched pallas_call over all documents (parallel grid axis)
    ctx, doc_emb = aggregate_entities_pallas(
        last_attention_lr, last_hidden,
        jnp.asarray(mean_mask_np), jnp.asarray(sum_mask_np))     # (n_docs, E, D) each

    cls_tokens = last_hidden[:, 0]                               # (n_docs, D)

    # labeled_pair(): keep (i, j) whose label vector has positive sum (host-side selection)
    d_ids, h_ids, t_ids = [], [], []
    for di in range(n_docs):
        e_real = len(entity_list[di])
        for i in range(e_real):
            for j in range(e_real):
                if labels_np[di, i, j].sum() > 0:
                    d_ids.append(di); h_ids.append(i); t_ids.append(j)
    d_ids = jnp.asarray(np.array(d_ids, np.int32))
    h_ids = jnp.asarray(np.array(h_ids, np.int32))
    t_ids = jnp.asarray(np.array(t_ids, np.int32))

    # one batched gather / stack on device (no per-pair jnp.stack loop)
    cls_g = cls_tokens[d_ids]                                    # (P, D)
    dh = doc_emb[d_ids, h_ids]                                   # (P, D)
    dt = doc_emb[d_ids, t_ids]                                   # (P, D)
    cc = ctx[d_ids, h_ids] * ctx[d_ids, t_ids]                   # (P, D)
    feature_set = jnp.stack([cls_g, dh, dt, cc], axis=1)         # (P, 4, 768)
    labels = jnp.asarray(labels_np)[d_ids, h_ids, t_ids]         # (P, 96)

    P = feature_set.shape[0]
    # pad the LSTM "batch" rows 4 -> 8 (independent rows; pads sliced off afterwards)
    feat_padded = jnp.concatenate(
        [feature_set, jnp.zeros((P, B_PAD - 4, D), jnp.float32)], axis=1)

    lstm_params = init_lstm_params(k_lstm)
    lstm_out = bilstm_2layer(feat_padded, lstm_params)           # (P, 8, 768)
    output = lstm_out[:, :4, :]                                  # (P, 4, 768)

    # TODO(synk): CapsNet(num_class=96) is an external, undefined class; the capsule head is not
    # reproducible, so the model output here is the bi-LSTM feature sequence.

    output, labels = jax.block_until_ready((output, labels))
    assert output.shape == (P, 4, 2 * H)
    assert labels.shape == (P, N_CLASS)
    assert np.isfinite(np.asarray(output)).all()
    print("KERNEL_OK")
</pallas_src>

<mosaic_0001>
module attributes {stable_mosaic.version = 11 : i64} {
  func.func @aggregate_kernel(%arg0: i32, %arg1: memref<1x128x128xf32, #tpu.memory_space<vmem>>, %arg2: memref<1x128x768xf32, #tpu.memory_space<vmem>>, %arg3: memref<1x8x128xf32, #tpu.memory_space<vmem>>, %arg4: memref<1x8x128xf32, #tpu.memory_space<vmem>>, %arg5: memref<1x8x768xf32, #tpu.memory_space<vmem>>, %arg6: memref<1x8x768xf32, #tpu.memory_space<vmem>>) attributes {dimension_semantics = [#tpu.dimension_semantics<parallel>], iteration_bounds = array<i64: 2>, scalar_prefetch = 0 : i64, scratch_operands = 0 : i64, tpu.core_type = #tpu.core_type<tc>, window_params = [{transform_indices = @transform_0, window_bounds = array<i64: 1, 128, 128>}, {transform_indices = @transform_1, window_bounds = array<i64: 1, 128, 768>}, {transform_indices = @transform_2, window_bounds = array<i64: 1, 8, 128>}, {transform_indices = @transform_3, window_bounds = array<i64: 1, 8, 128>}, {transform_indices = @transform_4, window_bounds = array<i64: 1, 8, 768>}, {transform_indices = @transform_5, window_bounds = array<i64: 1, 8, 768>}]} {
    %c0 = arith.constant 0 : index
    %c0_0 = arith.constant 0 : index
    %c0_1 = arith.constant 0 : index
    %0 = vector.load %arg2[%c0, %c0_0, %c0_1] : memref<1x128x768xf32, #tpu.memory_space<vmem>>, vector<1x128x768xf32>
    %1 = vector.shape_cast %0 : vector<1x128x768xf32> to vector<128x768xf32>
    %2 = arith.truncf %1 : vector<128x768xf32> to vector<128x768xbf16>
    %c0_2 = arith.constant 0 : index
    %c0_3 = arith.constant 0 : index
    %c0_4 = arith.constant 0 : index
    %3 = vector.load %arg1[%c0_2, %c0_3, %c0_4] : memref<1x128x128xf32, #tpu.memory_space<vmem>>, vector<1x128x128xf32>
    %4 = vector.shape_cast %3 : vector<1x128x128xf32> to vector<128x128xf32>
    %5 = arith.truncf %4 : vector<128x128xf32> to vector<128x128xbf16>
    %c0_5 = arith.constant 0 : index
    %c0_6 = arith.constant 0 : index
    %c0_7 = arith.constant 0 : index
    %6 = vector.load %arg3[%c0_5, %c0_6, %c0_7] : memref<1x8x128xf32, #tpu.memory_space<vmem>>, vector<1x8x128xf32>
    %7 = vector.shape_cast %6 : vector<1x8x128xf32> to vector<8x128xf32>
    %8 = arith.truncf %7 : vector<8x128xf32> to vector<8x128xbf16>
    %c0_8 = arith.constant 0 : index
    %c0_9 = arith.constant 0 : index
    %c0_10 = arith.constant 0 : index
    %9 = vector.load %arg4[%c0_8, %c0_9, %c0_10] : memref<1x8x128xf32, #tpu.memory_space<vmem>>, vector<1x8x128xf32>
    %10 = vector.shape_cast %9 : vector<1x8x128xf32> to vector<8x128xf32>
    %11 = arith.truncf %10 : vector<8x128xf32> to vector<8x128xbf16>
    %cst = arith.constant dense<0.000000e+00> : vector<8x128xf32>
    %12 = tpu.matmul %8, %5, %cst {dimension_numbers = #tpu.dot_dimension_numbers<[1], [0], [0], [1], [0, 0, 1, 1], [], []>} : vector<8x128xbf16>, vector<128x128xbf16>, vector<8x128xf32> -> vector<8x128xf32>
    %13 = arith.truncf %12 : vector<8x128xf32> to vector<8x128xbf16>
    %cst_11 = arith.constant dense<0.000000e+00> : vector<8x768xf32>
    %14 = tpu.matmul %13, %2, %cst_11 {dimension_numbers = #tpu.dot_dimension_numbers<[1], [0], [0], [1], [0, 0, 1, 1], [], []>} : vector<8x128xbf16>, vector<128x768xbf16>, vector<8x768xf32> -> vector<8x768xf32>
    %c0_12 = arith.constant 0 : index
    %c0_13 = arith.constant 0 : index
    %c0_14 = arith.constant 0 : index
    %15 = vector.load %arg5[%c0_12, %c0_13, %c0_14] : memref<1x8x768xf32, #tpu.memory_space<vmem>>, vector<1x8x768xf32>
    %16 = vector.shape_cast %15 : vector<1x8x768xf32> to vector<8x768xf32>
    %17 = vector.shape_cast %14 : vector<8x768xf32> to vector<1x8x768xf32>
    tpu.vector_store %arg5[%c0_12, %c0_13, %c0_14], %17 {strides = array<i32>} : memref<1x8x768xf32, #tpu.memory_space<vmem>>, vector<1x8x768xf32>,
    %cst_15 = arith.constant dense<0xFF800000> : vector<768xf32>
    %18 = vector.multi_reduction <maximumf>, %1, %cst_15 [0] : vector<128x768xf32> to vector<768xf32>
    %19 = vector.shape_cast %18 : vector<768xf32> to vector<1x768xf32>
    %20 = vector.broadcast %19 : vector<1x768xf32> to vector<128x768xf32>
    %21 = arith.subf %1, %20 : vector<128x768xf32>
    %22 = arith.truncf %21 : vector<128x768xf32> to vector<128x768xbf16>
    %23 = math.exp %22 : vector<128x768xbf16>
    %cst_16 = arith.constant dense<0.000000e+00> : vector<8x768xf32>
    %24 = tpu.matmul %11, %23, %cst_16 {dimension_numbers = #tpu.dot_dimension_numbers<[1], [0], [0], [1], [0, 0, 1, 1], [], []>} : vector<8x128xbf16>, vector<128x768xbf16>, vector<8x768xf32> -> vector<8x768xf32>
    %cst_17 = arith.constant 1.000000e-30 : f32
    %25 = vector.broadcast %cst_17 : f32 to vector<8x768xf32>
    %26 = arith.maximumf %24, %25 : vector<8x768xf32>
    %27 = math.log %26 : vector<8x768xf32>
    %28 = vector.broadcast %19 : vector<1x768xf32> to vector<8x768xf32>
    %29 = arith.addf %28, %27 : vector<8x768xf32>
    %c0_18 = arith.constant 0 : index
    %c0_19 = arith.constant 0 : index
    %c0_20 = arith.constant 0 : index
    %30 = vector.load %arg6[%c0_18, %c0_19, %c0_20] : memref<1x8x768xf32, #tpu.memory_space<vmem>>, vector<1x8x768xf32>
    %31 = vector.shape_cast %30 : vector<1x8x768xf32> to vector<8x768xf32>
    %32 = vector.shape_cast %29 : vector<8x768xf32> to vector<1x8x768xf32>
    tpu.vector_store %arg6[%c0_18, %c0_19, %c0_20], %32 {strides = array<i32>} : memref<1x8x768xf32, #tpu.memory_space<vmem>>, vector<1x8x768xf32>,
    return
  }
  func.func @transform_0(%arg0: i32) -> (i32, i32, i32) {
    %c0_i32 = arith.constant 0 : i32
    %c0_i32_0 = arith.constant 0 : i32
    %c0_i32_1 = arith.constant 0 : i32
    return %arg0, %c0_i32, %c0_i32_0 : i32, i32, i32
  }
  func.func @transform_1(%arg0: i32) -> (i32, i32, i32) {
    %c0_i32 = arith.constant 0 : i32
    %c0_i32_0 = arith.constant 0 : i32
    %c0_i32_1 = arith.constant 0 : i32
    return %arg0, %c0_i32, %c0_i32_0 : i32, i32, i32
  }
  func.func @transform_2(%arg0: i32) -> (i32, i32, i32) {
    %c0_i32 = arith.constant 0 : i32
    %c0_i32_0 = arith.constant 0 : i32
    %c0_i32_1 = arith.constant 0 : i32
    return %arg0, %c0_i32, %c0_i32_0 : i32, i32, i32
  }
  func.func @transform_3(%arg0: i32) -> (i32, i32, i32) {
    %c0_i32 = arith.constant 0 : i32
    %c0_i32_0 = arith.constant 0 : i32
    %c0_i32_1 = arith.constant 0 : i32
    return %arg0, %c0_i32, %c0_i32_0 : i32, i32, i32
  }
  func.func @transform_4(%arg0: i32) -> (i32, i32, i32) {
    %c0_i32 = arith.constant 0 : i32
    %c0_i32_0 = arith.constant 0 : i32
    %c0_i32_1 = arith.constant 0 : i32
    return %arg0, %c0_i32, %c0_i32_0 : i32, i32, i32
  }
  func.func @transform_5(%arg0: i32) -> (i32, i32, i32) {
    %c0_i32 = arith.constant 0 : i32
    %c0_i32_0 = arith.constant 0 : i32
    %c0_i32_1 = arith.constant 0 : i32
    return %arg0, %c0_i32, %c0_i32_0 : i32, i32, i32
  }
}

</mosaic_0001>

<llo_original>
// kernel: tpu_custom_call.1
$region0: #{tpu_custom_call.1}
  #allocation0 [shape = 'u32[]', space=smem, size = 0x4, offset = 0x4, fixed_abs, tag = 'smem constant byte address 0x4 - core index']
  #allocation1 [shape = 'u32[144,128]{1,0:T(1,128)}', space=vmem, size = 0x12000, scoped, tag = 'internal scratch']
  %s0 = inlined_call_operand.hbm [shape: f32[2,128,128], index: 0, kind: input, shape index: {}]
  %s1 = inlined_call_operand.hbm [shape: f32[2,128,768], index: 1, kind: input, shape index: {}]
  %s2 = inlined_call_operand.hbm [shape: f32[2,8,128], index: 2, kind: input, shape index: {}]
  %s3 = inlined_call_operand.hbm [shape: f32[2,8,128], index: 3, kind: input, shape index: {}]
  %s4 = inlined_call_operand.hbm [shape: f32[2,8,768], index: 4, kind: output, shape index: {0}]
  %s5 = inlined_call_operand.hbm [shape: f32[2,8,768], index: 5, kind: output, shape index: {1}]
  %6 = xla_tuple %s4, %s5
  %s7 = sld [smem:[#allocation0]]
  $region73: #{tpu_custom_call.1} parent=0
    _
  %s9 = ssub.s32 1, %s7
  %s10 = scalar_select 0, %s9, %s7
  $region1: #{tpu_custom_call.1} parent=0
    #allocation2 [shape = 'u8[131072]{0}', space=vmem, size = 0x20000, scoped, tag = 'input window, operand 0']
    #allocation3 [shape = 's32[2]{0}', space=sflag, size = 0x8, scoped, tag = 'scoped memory for tpu_custom_call.1']
    #allocation4 [shape = 's32[2]{0}', space=sflag, size = 0x8, scoped, tag = 'scoped memory for tpu_custom_call.1']
    #allocation5 [shape = 'u8[786432]{0}', space=vmem, size = 0xc0000, scoped, tag = 'input window, operand 1']
    #allocation6 [shape = 's32[2]{0}', space=sflag, size = 0x8, scoped, tag = 'scoped memory for tpu_custom_call.1']
    #allocation7 [shape = 'u8[8192]{0}', space=vmem, size = 0x2000, scoped, tag = 'input window, operand 2']
    #allocation8 [shape = 'u8[8192]{0}', space=vmem, size = 0x2000, scoped, tag = 'input window, operand 3']
    #allocation9 [shape = 's32[2]{0}', space=sflag, size = 0x8, scoped, tag = 'scoped memory for tpu_custom_call.1']
    #allocation10 [shape = 'u8[49152]{0}', space=vmem, size = 0xc000, scoped, tag = 'output window, operand 0']
    #allocation11 [shape = 'u8[49152]{0}', space=vmem, size = 0xc000, scoped, tag = 'output window, operand 1']
    #allocation12 [shape = 's32[2]{0}', space=sflag, size = 0x8, scoped, tag = 'scoped memory for tpu_custom_call.1']
    %11 = vsyncpa [#allocation3], 0
    %s12 = scalar_lea.sflag [#allocation3], 1
    %13 = vsyncpa %s12, 0
    %14 = vsyncpa [#allocation6], 0
    %s15 = scalar_lea.sflag [#allocation6], 1
    %16 = vsyncpa %s15, 0
    %17 = vsyncpa [#allocation9], 0
    %s18 = scalar_lea.sflag [#allocation9], 1
    %19 = vsyncpa %s18, 0
    %20 = vsyncpa [#allocation4], 0
    %s21 = scalar_lea.sflag [#allocation4], 1
    %22 = vsyncpa %s21, 0
    %23 = vsyncpa [#allocation12], 0
    %s24 = scalar_lea.sflag [#allocation12], 1
    %25 = vsyncpa %s24, 0
    loop: start=0, step=1, limit=4
    $region2: #{tpu_custom_call.1} parent=1 // loop_pre_header
      _
    $region3: #{tpu_custom_call.1} parent=1 // loop_header
      %s27 = sphi 0, %s31
      %p28 = scmp.ge.s32.totalorder %s27, 4
      %s37 = sphi 0, %s39
      %s40 = sphi 0, %s37
      %s41 = sphi 0, %s40
      %s57 = sphi 0, %s41
      %s63 = sphi 0, %s65
      %s66 = sphi 0, %s63
      %s67 = sphi 0, %s66
      %s83 = sphi 0, %s67
      %s89 = sphi 0, %s91
      %s92 = sphi 0, %s89
      %s93 = sphi 0, %s92
      %s109 = sphi 0, %s93
      %s115 = sphi 0, %s117
      %s118 = sphi 0, %s115
      %s119 = sphi 0, %s118
      %s135 = sphi 0, %s119
      %s141 = sphi 0, %s143
      %s144 = sphi 0, %s141
      %s145 = sphi 0, %s144
      %s161 = sphi 0, %s145
      %s167 = sphi 0, %s169
      %s170 = sphi 0, %s167
      %s171 = sphi 0, %s170
      %s187 = sphi 0, %s171
    $region4: #{tpu_custom_call.1} parent=1 // loop_header_branch
      %30 = sbr.rel (%p28) target = $region8
    $region5: #{tpu_custom_call.1} parent=1 // loop_body
      %s32 = ssub.s32 %s27, 1
      %s33 = ssub.s32 %s27, 2
      %s34 = sadd.s32 %s27, 1
      %s35 = ssub.s32 %s27, %s34
      %p36 = scmp.eq.s32.totalorder %s35, 0
      %s38 = sadd.s32 %s37, 1
      %s39 = scalar_select %p36, %s37, %s38
      %p42 = pneg %p36
      %p43 = scmp.eq.s32.totalorder %s27, 1
      %p44 = por %p42, %p43
      %p45 = scmp.ne.s32.totalorder %s37, %s40
      %p46 = scmp.eq.s32.totalorder %s27, 0
      %p47 = por %p45, %p46
      %p48 = scmp.ne.s32.totalorder %s37, %s40
      %p49 = scmp.eq.s32.totalorder %s32, 1
      %p50 = por %p48, %p49
      %p51 = scmp.ne.s32.totalorder %s40, %s41
      %p52 = scmp.eq.s32.totalorder %s32, 0
      %p53 = por %p51, %p52
      %p54 = scmp.ne.s32.totalorder %s40, %s41
      %p55 = scmp.eq.s32.totalorder %s33, 1
      %p56 = por %p54, %p55
      %p58 = scmp.ne.s32.totalorder %s41, %s57
      %p59 = scmp.eq.s32.totalorder %s33, 0
      %p60 = por %p58, %p59
      %s61 = ssub.s32 %s27, %s34
      %p62 = scmp.eq.s32.totalorder %s61, 0
      %s64 = sadd.s32 %s63, 1
      %s65 = scalar_select %p62, %s63, %s64
      %p68 = pneg %p62
      %p69 = scmp.eq.s32.totalorder %s27, 1
      %p70 = por %p68, %p69
      %p71 = scmp.ne.s32.totalorder %s63, %s66
      %p72 = scmp.eq.s32.totalorder %s27, 0
      %p73 = por %p71, %p72
      %p74 = scmp.ne.s32.totalorder %s63, %s66
      %p75 = scmp.eq.s32.totalorder %s32, 1
      %p76 = por %p74, %p75
      %p77 = scmp.ne.s32.totalorder %s66, %s67
      %p78 = scmp.eq.s32.totalorder %s32, 0
      %p79 = por %p77, %p78
      %p80 = scmp.ne.s32.totalorder %s66, %s67
      %p81 = scmp.eq.s32.totalorder %s33, 1
      %p82 = por %p80, %p81
      %p84 = scmp.ne.s32.totalorder %s67, %s83
      %p85 = scmp.eq.s32.totalorder %s33, 0
      %p86 = por %p84, %p85
      %s87 = ssub.s32 %s27, %s34
      %p88 = scmp.eq.s32.totalorder %s87, 0
      %s90 = sadd.s32 %s89, 1
      %s91 = scalar_select %p88, %s89, %s90
      %p94 = pneg %p88
      %p95 = scmp.eq.s32.totalorder %s27, 1
      %p96 = por %p94, %p95
      %p97 = scmp.ne.s32.totalorder %s89, %s92
      %p98 = scmp.eq.s32.totalorder %s27, 0
      %p99 = por %p97, %p98
      %p100 = scmp.ne.s32.totalorder %s89, %s92
      %p101 = scmp.eq.s32.totalorder %s32, 1
      %p102 = por %p100, %p101
      %p103 = scmp.ne.s32.totalorder %s92, %s93
      %p104 = scmp.eq.s32.totalorder %s32, 0
      %p105 = por %p103, %p104
      %p106 = scmp.ne.s32.totalorder %s92, %s93
      %p107 = scmp.eq.s32.totalorder %s33, 1
      %p108 = por %p106, %p107
      %p110 = scmp.ne.s32.totalorder %s93, %s109
      %p111 = scmp.eq.s32.totalorder %s33, 0
      %p112 = por %p110, %p111
      %s113 = ssub.s32 %s27, %s34
      %p114 = scmp.eq.s32.totalorder %s113, 0
      %s116 = sadd.s32 %s115, 1
      %s117 = scalar_select %p114, %s115, %s116
      %p120 = pneg %p114
      %p121 = scmp.eq.s32.totalorder %s27, 1
      %p122 = por %p120, %p121
      %p123 = scmp.ne.s32.totalorder %s115, %s118
      %p124 = scmp.eq.s32.totalorder %s27, 0
      %p125 = por %p123, %p124
      %p126 = scmp.ne.s32.totalorder %s115, %s118
      %p127 = scmp.eq.s32.totalorder %s32, 1
      %p128 = por %p126, %p127
      %p129 = scmp.ne.s32.totalorder %s118, %s119
      %p130 = scmp.eq.s32.totalorder %s32, 0
      %p131 = por %p129, %p130
      %p132 = scmp.ne.s32.totalorder %s118, %s119
      %p133 = scmp.eq.s32.totalorder %s33, 1
      %p134 = por %p132, %p133
      %p136 = scmp.ne.s32.totalorder %s119, %s135
      %p137 = scmp.eq.s32.totalorder %s33, 0
      %p138 = por %p136, %p137
      %s139 = ssub.s32 %s27, %s34
      %p140 = scmp.eq.s32.totalorder %s139, 0
      %s142 = sadd.s32 %s141, 1
      %s143 = scalar_select %p140, %s141, %s142
      %p146 = pneg %p140
      %p147 = scmp.eq.s32.totalorder %s27, 1
      %p148 = por %p146, %p147
      %p149 = scmp.ne.s32.totalorder %s141, %s144
      %p150 = scmp.eq.s32.totalorder %s27, 0
      %p151 = por %p149, %p150
      %p152 = scmp.ne.s32.totalorder %s141, %s144
      %p153 = scmp.eq.s32.totalorder %s32, 1
      %p154 = por %p152, %p153
      %p155 = scmp.ne.s32.totalorder %s144, %s145
      %p156 = scmp.eq.s32.totalorder %s32, 0
      %p157 = por %p155, %p156
      %p158 = scmp.ne.s32.totalorder %s144, %s145
      %p159 = scmp.eq.s32.totalorder %s33, 1
      %p160 = por %p158, %p159
      %p162 = scmp.ne.s32.totalorder %s145, %s161
      %p163 = scmp.eq.s32.totalorder %s33, 0
      %p164 = por %p162, %p163
      %s165 = ssub.s32 %s27, %s34
      %p166 = scmp.eq.s32.totalorder %s165, 0
      %s168 = sadd.s32 %s167, 1
      %s169 = scalar_select %p166, %s167, %s168
      %p172 = pneg %p166
      %p173 = scmp.eq.s32.totalorder %s27, 1
      %p174 = por %p172, %p173
      %p175 = scmp.ne.s32.totalorder %s167, %s170
      %p176 = scmp.eq.s32.totalorder %s27, 0
      %p177 = por %p175, %p176
      %p178 = scmp.ne.s32.totalorder %s167, %s170
      %p179 = scmp.eq.s32.totalorder %s32, 1
      %p180 = por %p178, %p179
      %p181 = scmp.ne.s32.totalorder %s170, %s171
      %p182 = scmp.eq.s32.totalorder %s32, 0
      %p183 = por %p181, %p182
      %p184 = scmp.ne.s32.totalorder %s170, %s171
      %p185 = scmp.eq.s32.totalorder %s33, 1
      %p186 = por %p184, %p185
      %p188 = scmp.ne.s32.totalorder %s171, %s187
      %p189 = scmp.eq.s32.totalorder %s33, 0
      %p190 = por %p188, %p189
      %p191 = scmp.le.s32.totalorder 1, %s27
      %p192 = scmp.lt.s32.totalorder %s27, 3
      %p193 = pnand %p191, %p192
      %p194 = pneg %p193
      // Predicated region
      $region9: #{tpu_custom_call.1} parent=5 // pred_check
        _
      $region10: #{tpu_custom_call.1} parent=5 // pred_check_branch
        %196 = sbr.rel (%p193) target = $region12
      $region11: #{tpu_custom_call.1} parent=5 // pred_region
        %s197 = ssub.s32 %s27, 1
      $region12: #{tpu_custom_call.1} parent=5 // pred_fallthru
        _
      %p198 = scmp.lt.s32.totalorder %s27, 2
      // Predicated region
      $region13: #{tpu_custom_call.1} parent=5 // pred_check
        %p199 = pneg %p198
      $region14: #{tpu_custom_call.1} parent=5 // pred_check_branch
        %201 = sbr.rel (%p199) target = $region16
      $region15: #{tpu_custom_call.1} parent=5 // pred_region
        // Predicated region
        $region17: #{tpu_custom_call.1} parent=15 // pred_check
          %p202 = pneg %p47
        $region18: #{tpu_custom_call.1} parent=15 // pred_check_branch
          %204 = sbr.rel (%p202) target = $region20
        $region19: #{tpu_custom_call.1} parent=15 // pred_region
          %s205 = sand.u32 %s37, 1
          %s206 = scalar_lea.sflag [#allocation3], %s205
          %s207 = sand.u32 %s37, 1
          %s208 = smul.addr %s207, 128
          %s209 = scalar_lea.vmem [#allocation2], %s208
          %s211 = ssub.s32 2048, 2048
          %212 = vsyncadd %s206, %s211
          %s213 = smul.addr %s27, 16
          %s214 = smul.addr %s213, 128
          %s215 = scalar_lea.hbm %s0, %s214
          %s216 = sshll.u32 %s209, 4
          %s217 = int_to_ptr.vmem [resolvable:$true] %s216
          %222 = dma.hbm_to_vmem [thread:$0]  %s215, 2048, %s217, %s206, 128, 128, 8
        $region20: #{tpu_custom_call.1} parent=15 // pred_fallthru
          _
        // Predicated region
        $region21: #{tpu_custom_call.1} parent=15 // pred_check
          %p223 = pneg %p73
        $region22: #{tpu_custom_call.1} parent=15 // pred_check_branch
          %225 = sbr.rel (%p223) target = $region24
        $region23: #{tpu_custom_call.1} parent=15 // pred_region
          %s226 = sand.u32 %s27, 1
          %s227 = scalar_lea.sflag [#allocation6], %s226
          %s228 = sand.u32 %s63, 1
          %s229 = smul.addr %s228, 768
          %s230 = scalar_lea.vmem [#allocation5], %s229
          %s232 = ssub.s32 12288, 12288
          %233 = vsyncadd %s227, %s232
          %s234 = smul.addr %s27, 96
          %s235 = smul.addr %s234, 128
          %s236 = scalar_lea.hbm %s1, %s235
          %s237 = sshll.u32 %s230, 4
          %s238 = int_to_ptr.vmem [resolvable:$true] %s237
          %243 = dma.hbm_to_vmem [thread:$0]  %s236, 12288, %s238, %s227, 768, 768, 48
        $region24: #{tpu_custom_call.1} parent=15 // pred_fallthru
          _
        // Predicated region
        $region25: #{tpu_custom_call.1} parent=15 // pred_check
          %p244 = pneg %p99
        $region26: #{tpu_custom_call.1} parent=15 // pred_check_branch
          %246 = sbr.rel (%p244) target = $region28
        $region27: #{tpu_custom_call.1} parent=15 // pred_region
          %s247 = sand.u32 %s27, 1
          %s248 = scalar_lea.sflag [#allocation6], %s247
          %s249 = sand.u32 %s89, 1
          %s250 = smul.addr %s249, 8
          %s251 = scalar_lea.vmem [#allocation7], %s250
          %s253 = ssub.s32 128, 128
          %254 = vsyncadd %s248, %s253
          %s255 = smul.addr %s27, 128
          %s256 = scalar_lea.hbm %s2, %s255
          %s258 = sshll.u32 %s251, 4
          %s259 = int_to_ptr.vmem [resolvable:$true] %s258
          %261 = dma.hbm_to_vmem [thread:$0]  %s256, 128, %s259, %s248
        $region28: #{tpu_custom_call.1} parent=15 // pred_fallthru
          _
        // Predicated region
        $region29: #{tpu_custom_call.1} parent=15 // pred_check
          %p262 = pneg %p125
        $region30: #{tpu_custom_call.1} parent=15 // pred_check_branch
          %264 = sbr.rel (%p262) target = $region32
        $region31: #{tpu_custom_call.1} parent=15 // pred_region
          %s265 = sand.u32 %s115, 1
          %s266 = scalar_lea.sflag [#allocation9], %s265
          %s267 = sand.u32 %s115, 1
          %s268 = smul.addr %s267, 8
          %s269 = scalar_lea.vmem [#allocation8], %s268
          %s271 = ssub.s32 128, 128
          %272 = vsyncadd %s266, %s271
          %s273 = smul.addr %s27, 128
          %s274 = scalar_lea.hbm %s3, %s273
          %s276 = sshll.u32 %s269, 4
          %s277 = int_to_ptr.vmem [resolvable:$true] %s276
          %279 = dma.hbm_to_vmem [thread:$0]  %s274, 128, %s277, %s266
        $region32: #{tpu_custom_call.1} parent=15 // pred_fallthru
          _
      $region16: #{tpu_custom_call.1} parent=5 // pred_fallthru
        _
      %p280 = scmp.le.s32.totalorder 1, %s27
      %p281 = scmp.lt.s32.totalorder %s27, 3
      %p282 = pnand %p280, %p281
      %p283 = pneg %p282
      // Predicated region
      $region33: #{tpu_custom_call.1} parent=5 // pred_check
        _
      $region34: #{tpu_custom_call.1} parent=5 // pred_check_branch
        %285 = sbr.rel (%p282) target = $region36
      $region35: #{tpu_custom_call.1} parent=5 // pred_region
        %s286 = ssub.s32 %s27, 1
        %s287 = sand.u32 %s40, 1
        %s288 = scalar_lea.sflag [#allocation3], %s287
        %s289 = sand.u32 %s40, 1
        %s290 = smul.addr %s289, 128
        %s291 = scalar_lea.vmem [#allocation2], %s290
        // Predicated region
        $region37: #{tpu_custom_call.1} parent=35 // pred_check
          %p292 = pneg %p53
        $region38: #{tpu_custom_call.1} parent=35 // pred_check_branch
          %294 = sbr.rel (%p292) target = $region40
        $region39: #{tpu_custom_call.1} parent=35 // pred_region
          %295 = dma.done %s288, 2048
        $region40: #{tpu_custom_call.1} parent=35 // pred_fallthru
          _
        %s296 = sand.u32 %s32, 1
        %s297 = scalar_lea.sflag [#allocation6], %s296
        %s298 = sand.u32 %s66, 1
        %s299 = smul.addr %s298, 768
        %s300 = scalar_lea.vmem [#allocation5], %s299
        // Predicated region
        $region41: #{tpu_custom_call.1} parent=35 // pred_check
          %p301 = pneg %p79
        $region42: #{tpu_custom_call.1} parent=35 // pred_check_branch
          %303 = sbr.rel (%p301) target = $region44
        $region43: #{tpu_custom_call.1} parent=35 // pred_region
          %304 = dma.done %s297, 12288
        $region44: #{tpu_custom_call.1} parent=35 // pred_fallthru
          _
        %s305 = sand.u32 %s32, 1
        %s306 = scalar_lea.sflag [#allocation6], %s305
        %s307 = sand.u32 %s92, 1
        %s308 = smul.addr %s307, 8
        %s309 = scalar_lea.vmem [#allocation7], %s308
        // Predicated region
        $region45: #{tpu_custom_call.1} parent=35 // pred_check
          %p310 = pneg %p105
        $region46: #{tpu_custom_call.1} parent=35 // pred_check_branch
          %312 = sbr.rel (%p310) target = $region48
        $region47: #{tpu_custom_call.1} parent=35 // pred_region
          %313 = dma.done %s306, 128
        $region48: #{tpu_custom_call.1} parent=35 // pred_fallthru
          _
        %s314 = sand.u32 %s118, 1
        %s315 = scalar_lea.sflag [#allocation9], %s314
        %s316 = sand.u32 %s118, 1
        %s317 = smul.addr %s316, 8
        %s318 = scalar_lea.vmem [#allocation8], %s317
        // Predicated region
        $region49: #{tpu_custom_call.1} parent=35 // pred_check
          %p319 = pneg %p131
        $region50: #{tpu_custom_call.1} parent=35 // pred_check_branch
          %321 = sbr.rel (%p319) target = $region52
        $region51: #{tpu_custom_call.1} parent=35 // pred_region
          %322 = dma.done %s315, 128
        $region52: #{tpu_custom_call.1} parent=35 // pred_fallthru
          _
        %s323 = sand.u32 %s40, 1
        %s324 = scalar_lea.sflag [#allocation3], %s323
        %s325 = sand.u32 %s40, 1
        %s326 = smul.addr %s325, 128
        %s327 = scalar_lea.vmem [#allocation2], %s326
        %p328 = pneg %p53
        %p329 = pneg %p50
        %s330 = sand.u32 %s32, 1
        %s331 = scalar_lea.sflag [#allocation6], %s330
        %s332 = sand.u32 %s66, 1
        %s333 = smul.addr %s332, 768
        %s334 = scalar_lea.vmem [#allocation5], %s333
        %p335 = pneg %p79
        %p336 = pneg %p76
        %s337 = sand.u32 %s32, 1
        %s338 = scalar_lea.sflag [#allocation6], %s337
        %s339 = sand.u32 %s92, 1
        %s340 = smul.addr %s339, 8
        %s341 = scalar_lea.vmem [#allocation7], %s340
        %p342 = pneg %p105
        %p343 = pneg %p102
        %s344 = sand.u32 %s118, 1
        %s345 = scalar_lea.sflag [#allocation9], %s344
        %s346 = sand.u32 %s118, 1
        %s347 = smul.addr %s346, 8
        %s348 = scalar_lea.vmem [#allocation8], %s347
        %p349 = pneg %p131
        %p350 = pneg %p128
        %p351 = pneg %p157
        %p352 = pneg %p154
        %s353 = sand.u32 %s144, 1
        %s354 = scalar_lea.sflag [#allocation4], %s353
        %s355 = sand.u32 %s144, 1
        %s356 = smul.addr %s355, 48
        %s357 = scalar_lea.vmem [#allocation10], %s356
        %p358 = pneg %p183
        %p359 = pneg %p180
        %s360 = sand.u32 %s170, 1
        %s361 = scalar_lea.sflag [#allocation12], %s360
        %s362 = sand.u32 %s170, 1
        %s363 = smul.addr %s362, 48
        %s364 = scalar_lea.vmem [#allocation11], %s363
        %v366 = vld [vmem:[%s300] sm:$0xff]
        %v367 = vld [vmem:[%s300 + $0x8] sm:$0xff]
        %v368 = vld [vmem:[%s300 + $0x10] sm:$0xff]
        %v369 = vld [vmem:[%s300 + $0x18] sm:$0xff]
        %v370 = vld [vmem:[%s300 + $0x20] sm:$0xff]
        %v371 = vld [vmem:[%s300 + $0x28] sm:$0xff]
        %v372 = vld [vmem:[%s300 + $0x30] sm:$0xff]
        %v373 = vld [vmem:[%s300 + $0x38] sm:$0xff]
        %v374 = vld [vmem:[%s300 + $0x40] sm:$0xff]
        %v375 = vld [vmem:[%s300 + $0x48] sm:$0xff]
        %v376 = vld [vmem:[%s300 + $0x50] sm:$0xff]
        %v377 = vld [vmem:[%s300 + $0x58] sm:$0xff]
        %v378 = vld [vmem:[%s300 + $0x60] sm:$0xff]
        %v379 = vld [vmem:[%s300 + $0x68] sm:$0xff]
        %v380 = vld [vmem:[%s300 + $0x70] sm:$0xff]
        %v381 = vld [vmem:[%s300 + $0x78] sm:$0xff]
        %v382 = vld [vmem:[%s300 + $0x80] sm:$0xff]
        %v383 = vld [vmem:[%s300 + $0x88] sm:$0xff]
        %v384 = vld [vmem:[%s300 + $0x90] sm:$0xff]
        %v385 = vld [vmem:[%s300 + $0x98] sm:$0xff]
        %v386 = vld [vmem:[%s300 + $0xa0] sm:$0xff]
        %v387 = vld [vmem:[%s300 + $0xa8] sm:$0xff]
        %v388 = vld [vmem:[%s300 + $0xb0] sm:$0xff]
        %v389 = vld [vmem:[%s300 + $0xb8] sm:$0xff]
        %v390 = vld [vmem:[%s300 + $0xc0] sm:$0xff]
        %v391 = vld [vmem:[%s300 + $0xc8] sm:$0xff]
        %v392 = vld [vmem:[%s300 + $0xd0] sm:$0xff]
        %v393 = vld [vmem:[%s300 + $0xd8] sm:$0xff]
        %v394 = vld [vmem:[%s300 + $0xe0] sm:$0xff]
        %v395 = vld [vmem:[%s300 + $0xe8] sm:$0xff]
        %v396 = vld [vmem:[%s300 + $0xf0] sm:$0xff]
        %v397 = vld [vmem:[%s300 + $0xf8] sm:$0xff]
        %v398 = vld [vmem:[%s300 + $0x100] sm:$0xff]
        %v399 = vld [vmem:[%s300 + $0x108] sm:$0xff]
        %v400 = vld [vmem:[%s300 + $0x110] sm:$0xff]
        %v401 = vld [vmem:[%s300 + $0x118] sm:$0xff]
        %v402 = vld [vmem:[%s300 + $0x120] sm:$0xff]
        %v403 = vld [vmem:[%s300 + $0x128] sm:$0xff]
        %v404 = vld [vmem:[%s300 + $0x130] sm:$0xff]
        %v405 = vld [vmem:[%s300 + $0x138] sm:$0xff]
        %v406 = vld [vmem:[%s300 + $0x140] sm:$0xff]
        %v407 = vld [vmem:[%s300 + $0x148] sm:$0xff]
        %v408 = vld [vmem:[%s300 + $0x150] sm:$0xff]
        %v409 = vld [vmem:[%s300 + $0x158] sm:$0xff]
        %v410 = vld [vmem:[%s300 + $0x160] sm:$0xff]
        %v411 = vld [vmem:[%s300 + $0x168] sm:$0xff]
        %v412 = vld [vmem:[%s300 + $0x170] sm:$0xff]
        %v413 = vld [vmem:[%s300 + $0x178] sm:$0xff]
        %v414 = vld [vmem:[%s300 + $0x180] sm:$0xff]
        %v415 = vld [vmem:[%s300 + $0x188] sm:$0xff]
        %v416 = vld [vmem:[%s300 + $0x190] sm:$0xff]
        %v417 = vld [vmem:[%s300 + $0x198] sm:$0xff]
        %v418 = vld [vmem:[%s300 + $0x1a0] sm:$0xff]
        %v419 = vld [vmem:[%s300 + $0x1a8] sm:$0xff]
        %v420 = vld [vmem:[%s300 + $0x1b0] sm:$0xff]
        %v421 = vld [vmem:[%s300 + $0x1b8] sm:$0xff]
        %v422 = vld [vmem:[%s300 + $0x1c0] sm:$0xff]
        %v423 = vld [vmem:[%s300 + $0x1c8] sm:$0xff]
        %v424 = vld [vmem:[%s300 + $0x1d0] sm:$0xff]
        %v425 = vld [vmem:[%s300 + $0x1d8] sm:$0xff]
        %v426 = vld [vmem:[%s300 + $0x1e0] sm:$0xff]
        %v427 = vld [vmem:[%s300 + $0x1e8] sm:$0xff]
        %v428 = vld [vmem:[%s300 + $0x1f0] sm:$0xff]
        %v429 = vld [vmem:[%s300 + $0x1f8] sm:$0xff]
        %v430 = vld [vmem:[%s300 + $0x200] sm:$0xff]
        %v431 = vld [vmem:[%s300 + $0x208] sm:$0xff]
        %v432 = vld [vmem:[%s300 + $0x210] sm:$0xff]
        %v433 = vld [vmem:[%s300 + $0x218] sm:$0xff]
        %v434 = vld [vmem:[%s300 + $0x220] sm:$0xff]
        %v435 = vld [vmem:[%s300 + $0x228] sm:$0xff]
        %v436 = vld [vmem:[%s300 + $0x230] sm:$0xff]
        %v437 = vld [vmem:[%s300 + $0x238] sm:$0xff]
        %v438 = vld [vmem:[%s300 + $0x240] sm:$0xff]
        %v439 = vld [vmem:[%s300 + $0x248] sm:$0xff]
        %v440 = vld [vmem:[%s300 + $0x250] sm:$0xff]
        %v441 = vld [vmem:[%s300 + $0x258] sm:$0xff]
        %v442 = vld [vmem:[%s300 + $0x260] sm:$0xff]
        %v443 = vld [vmem:[%s300 + $0x268] sm:$0xff]
        %v444 = vld [vmem:[%s300 + $0x270] sm:$0xff]
        %v445 = vld [vmem:[%s300 + $0x278] sm:$0xff]
        %v446 = vld [vmem:[%s300 + $0x280] sm:$0xff]
        %v447 = vld [vmem:[%s300 + $0x288] sm:$0xff]
        %v448 = vld [vmem:[%s300 + $0x290] sm:$0xff]
        %v449 = vld [vmem:[%s300 + $0x298] sm:$0xff]
        %v450 = vld [vmem:[%s300 + $0x2a0] sm:$0xff]
        %v451 = vld [vmem:[%s300 + $0x2a8] sm:$0xff]
        %v452 = vld [vmem:[%s300 + $0x2b0] sm:$0xff]
        %v453 = vld [vmem:[%s300 + $0x2b8] sm:$0xff]
        %v454 = vld [vmem:[%s300 + $0x2c0] sm:$0xff]
        %v455 = vld [vmem:[%s300 + $0x2c8] sm:$0xff]
        %v456 = vld [vmem:[%s300 + $0x2d0] sm:$0xff]
        %v457 = vld [vmem:[%s300 + $0x2d8] sm:$0xff]
        %v458 = vld [vmem:[%s300 + $0x2e0] sm:$0xff]
        %v459 = vld [vmem:[%s300 + $0x2e8] sm:$0xff]
        %v460 = vld [vmem:[%s300 + $0x2f0] sm:$0xff]
        %v461 = vld [vmem:[%s300 + $0x2f8] sm:$0xff]
        %v462 = vpack.c.bf16 %v372, %v366
        %v463 = vpack.c.bf16 %v373, %v367
        %v464 = vpack.c.bf16 %v374, %v368
        %v465 = vpack.c.bf16 %v375, %v369
        %v466 = vpack.c.bf16 %v376, %v370
        %v467 = vpack.c.bf16 %v377, %v371
        %v468 = vpack.c.bf16 %v384, %v378
        %v469 = vpack.c.bf16 %v385, %v379
        %v470 = vpack.c.bf16 %v386, %v380
        %v471 = vpack.c.bf16 %v387, %v381
        %v472 = vpack.c.bf16 %v388, %v382
        %v473 = vpack.c.bf16 %v389, %v383
        %v474 = vpack.c.bf16 %v396, %v390
        %v475 = vpack.c.bf16 %v397, %v391
        %v476 = vpack.c.bf16 %v398, %v392
        %v477 = vpack.c.bf16 %v399, %v393
        %v478 = vpack.c.bf16 %v400, %v394
        %v479 = vpack.c.bf16 %v401, %v395
        %v480 = vpack.c.bf16 %v408, %v402
        %v481 = vpack.c.bf16 %v409, %v403
        %v482 = vpack.c.bf16 %v410, %v404
        %v483 = vpack.c.bf16 %v411, %v405
        %v484 = vpack.c.bf16 %v412, %v406
        %v485 = vpack.c.bf16 %v413, %v407
        %v486 = vpack.c.bf16 %v420, %v414
        %v487 = vpack.c.bf16 %v421, %v415
        %v488 = vpack.c.bf16 %v422, %v416
        %v489 = vpack.c.bf16 %v423, %v417
        %v490 = vpack.c.bf16 %v424, %v418
        %v491 = vpack.c.bf16 %v425, %v419
        %v492 = vpack.c.bf16 %v432, %v426
        %v493 = vpack.c.bf16 %v433, %v427
        %v494 = vpack.c.bf16 %v434, %v428
        %v495 = vpack.c.bf16 %v435, %v429
        %v496 = vpack.c.bf16 %v436, %v430
        %v497 = vpack.c.bf16 %v437, %v431
        %v498 = vpack.c.bf16 %v444, %v438
        %v499 = vpack.c.bf16 %v445, %v439
        %v500 = vpack.c.bf16 %v446, %v440
        %v501 = vpack.c.bf16 %v447, %v441
        %v502 = vpack.c.bf16 %v448, %v442
        %v503 = vpack.c.bf16 %v449, %v443
        %v504 = vpack.c.bf16 %v456, %v450
        %v505 = vpack.c.bf16 %v457, %v451
        %v506 = vpack.c.bf16 %v458, %v452
        %v507 = vpack.c.bf16 %v459, %v453
        %v508 = vpack.c.bf16 %v460, %v454
        %v509 = vpack.c.bf16 %v461, %v455
        %v510 = vld [vmem:[%s291] sm:$0xff]
        %v511 = vld [vmem:[%s291 + $0x8] sm:$0xff]
        %v512 = vld [vmem:[%s291 + $0x10] sm:$0xff]
        %v513 = vld [vmem:[%s291 + $0x18] sm:$0xff]
        %v514 = vld [vmem:[%s291 + $0x20] sm:$0xff]
        %v515 = vld [vmem:[%s291 + $0x28] sm:$0xff]
        %v516 = vld [vmem:[%s291 + $0x30] sm:$0xff]
        %v517 = vld [vmem:[%s291 + $0x38] sm:$0xff]
        %v518 = vld [vmem:[%s291 + $0x40] sm:$0xff]
        %v519 = vld [vmem:[%s291 + $0x48] sm:$0xff]
        %v520 = vld [vmem:[%s291 + $0x50] sm:$0xff]
        %v521 = vld [vmem:[%s291 + $0x58] sm:$0xff]
        %v522 = vld [vmem:[%s291 + $0x60] sm:$0xff]
        %v523 = vld [vmem:[%s291 + $0x68] sm:$0xff]
        %v524 = vld [vmem:[%s291 + $0x70] sm:$0xff]
        %v525 = vld [vmem:[%s291 + $0x78] sm:$0xff]
        %v526 = vpack.c.bf16 %v511, %v510
        %v527 = vpack.c.bf16 %v513, %v512
        %v528 = vpack.c.bf16 %v515, %v514
        %v529 = vpack.c.bf16 %v517, %v516
        %v530 = vpack.c.bf16 %v519, %v518
        %v531 = vpack.c.bf16 %v521, %v520
        %v532 = vpack.c.bf16 %v523, %v522
        %v533 = vpack.c.bf16 %v525, %v524
        %v534 = vld [vmem:[%s309] sm:$0xff]
        %v535 = vpack.c.bf16 %v534, %v534
        %v536 = vld [vmem:[%s318] sm:$0xff]
        %v537 = vpack.c.bf16 %v536, %v536
        %538 = vmatprep.subr.bf16.mxu0 0
        %539 = vmatpush1.bf16.msra.mxu0 %v533
        %540 = vmatprep.subr.bf16.mxu0 0
        %541 = vmatpush1.bf16.msra.mxu0 %v532
        %542 = vmatprep.subr.bf16.mxu0 0
        %543 = vmatpush1.bf16.msra.mxu0 %v531
        %544 = vmatprep.subr.bf16.mxu0 0
        %545 = vmatpush1.bf16.msra.mxu0 %v530
        %546 = vmatprep.subr.bf16.mxu0 0
        %547 = vmatpush1.bf16.msra.mxu0 %v529
        %548 = vmatprep.subr.bf16.mxu0 0
        %549 = vmatpush1.bf16.msra.mxu0 %v528
        %550 = vmatprep.subr.bf16.mxu0 0
        %551 = vmatpush1.bf16.msra.mxu0 %v527
        %552 = vmatprep.subr.bf16.mxu0 0
        %553 = vmatpush1.bf16.msra.mxu0 %v526
        %554 = vmatprep.subr.bf16.mxu0 0
        %555 = vmatpush2.bf16.msra.mxu0 0
        %556 = vmatprep.subr.bf16.mxu0 0
        %557 = vmatpush2.bf16.msra.mxu0 0
        %558 = vmatprep.subr.bf16.mxu0 0
        %559 = vmatpush2.bf16.msra.mxu0 0
        %560 = vmatprep.subr.bf16.mxu0 0
        %561 = vmatpush2.bf16.msra.mxu0 0
        %562 = vmatprep.subr.bf16.mxu0 0
        %563 = vmatpush2.bf16.msra.mxu0 0
        %564 = vmatprep.subr.bf16.mxu0 0
        %565 = vmatpush2.bf16.msra.mxu0 0
        %566 = vmatprep.subr.bf16.mxu0 0
        %567 = vmatpush2.bf16.msra.mxu0 0
        %568 = vmatprep.subr.bf16.mxu0 0
        %569 = vmatpush2.bf16.msra.mxu0 0
        %570 = vmatprep.mubr.bf16.mxu0 0
        %571 = vmatmul.mubr.bf16.gmra.mxu0 %v535
        %v572 = vpop.f32.mrf.mxu0
        %v573 = vadd.f32 0.0, %v572
        %v574 = vpop.f32.mrf.mxu0
        %v575 = vpop.f32.mrf.mxu0
        %v576 = vpop.f32.mrf.mxu0
        %577 = vdwg.mxu0
        %v578 = vpack.c.bf16 %v573, %v573
        %579 = vmatprep.subr.bf16.mxu0 %v505
        %580 = vmatpush1.bf16.msra.mxu0 %v504
        %581 = vmatprep.subr.bf16.mxu0 %v499
        %582 = vmatpush1.bf16.msra.mxu0 %v498
        %583 = vmatprep.subr.bf16.mxu0 %v493
        %584 = vmatpush1.bf16.msra.mxu0 %v492
        %585 = vmatprep.subr.bf16.mxu0 %v487
        %586 = vmatpush1.bf16.msra.mxu0 %v486
        %587 = vmatprep.subr.bf16.mxu0 %v481
        %588 = vmatpush1.bf16.msra.mxu0 %v480
        %589 = vmatprep.subr.bf16.mxu0 %v475
        %590 = vmatpush1.bf16.msra.mxu0 %v474
        %591 = vmatprep.subr.bf16.mxu0 %v469
        %592 = vmatpush1.bf16.msra.mxu0 %v468
        %593 = vmatprep.subr.bf16.mxu0 %v463
        %594 = vmatpush1.bf16.msra.mxu0 %v462
        %595 = vmatprep.subr.bf16.mxu0 0
        %596 = vmatpush2.bf16.msra.mxu0 0
        %597 = vmatprep.subr.bf16.mxu0 0
        %598 = vmatpush2.bf16.msra.mxu0 0
        %599 = vmatprep.subr.bf16.mxu0 0
        %600 = vmatpush2.bf16.msra.mxu0 0
        %601 = vmatprep.subr.bf16.mxu0 0
        %602 = vmatpush2.bf16.msra.mxu0 0
        %603 = vmatprep.subr.bf16.mxu0 0
        %604 = vmatpush2.bf16.msra.mxu0 0
        %605 = vmatprep.subr.bf16.mxu0 0
        %606 = vmatpush2.bf16.msra.mxu0 0
        %607 = vmatprep.subr.bf16.mxu0 0
        %608 = vmatpush2.bf16.msra.mxu0 0
        %609 = vmatprep.subr.bf16.mxu0 0
        %610 = vmatpush2.bf16.msra.mxu0 0
        %611 = vmatprep.mubr.bf16.mxu0 0
        %612 = vmatmul.mubr.bf16.gmra.mxu0 %v578
        %v613 = vpop.f32.mrf.mxu0
        %v614 = vadd.f32 0.0, %v613
        %v615 = vpop.f32.mrf.mxu0
        %v616 = vadd.f32 0.0, %v615
        %v617 = vpop.f32.mrf.mxu0
        %v618 = vpop.f32.mrf.mxu0
        %619 = vdwg.mxu0
        %620 = vmatprep.subr.bf16.mxu0 %v507
        %621 = vmatpush1.bf16.msra.mxu0 %v506
        %622 = vmatprep.subr.bf16.mxu0 %v501
        %623 = vmatpush1.bf16.msra.mxu0 %v500
        %624 = vmatprep.subr.bf16.mxu0 %v495
        %625 = vmatpush1.bf16.msra.mxu0 %v494
        %626 = vmatprep.subr.bf16.mxu0 %v489
        %627 = vmatpush1.bf16.msra.mxu0 %v488
        %628 = vmatprep.subr.bf16.mxu0 %v483
        %629 = vmatpush1.bf16.msra.mxu0 %v482
        %630 = vmatprep.subr.bf16.mxu0 %v477
        %631 = vmatpush1.bf16.msra.mxu0 %v476
        %632 = vmatprep.subr.bf16.mxu0 %v471
        %633 = vmatpush1.bf16.msra.mxu0 %v470
        %634 = vmatprep.subr.bf16.mxu0 %v465
        %635 = vmatpush1.bf16.msra.mxu0 %v464
        %636 = vmatprep.subr.bf16.mxu0 0
        %637 = vmatpush2.bf16.msra.mxu0 0
        %638 = vmatprep.subr.bf16.mxu0 0
        %639 = vmatpush2.bf16.msra.mxu0 0
        %640 = vmatprep.subr.bf16.mxu0 0
        %641 = vmatpush2.bf16.msra.mxu0 0
        %642 = vmatprep.subr.bf16.mxu0 0
        %643 = vmatpush2.bf16.msra.mxu0 0
        %644 = vmatprep.subr.bf16.mxu0 0
        %645 = vmatpush2.bf16.msra.mxu0 0
        %646 = vmatprep.subr.bf16.mxu0 0
        %647 = vmatpush2.bf16.msra.mxu0 0
        %648 = vmatprep.subr.bf16.mxu0 0
        %649 = vmatpush2.bf16.msra.mxu0 0
        %650 = vmatprep.subr.bf16.mxu0 0
        %651 = vmatpush2.bf16.msra.mxu0 0
        %652 = vmatprep.mubr.bf16.mxu0 0
        %653 = vmatmul.mubr.bf16.gmra.mxu0 %v578
        %v654 = vpop.f32.mrf.mxu0
        %v655 = vadd.f32 0.0, %v654
        %v656 = vpop.f32.mrf.mxu0
        %v657 = vadd.f32 0.0, %v656
        %v658 = vpop.f32.mrf.mxu0
        %v659 = vpop.f32.mrf.mxu0
        %660 = vdwg.mxu0
        %661 = vmatprep.subr.bf16.mxu0 %v509
        %662 = vmatpush1.bf16.msra.mxu0 %v508
        %663 = vmatprep.subr.bf16.mxu0 %v503
        %664 = vmatpush1.bf16.msra.mxu0 %v502
        %665 = vmatprep.subr.bf16.mxu0 %v497
        %666 = vmatpush1.bf16.msra.mxu0 %v496
        %667 = vmatprep.subr.bf16.mxu0 %v491
        %668 = vmatpush1.bf16.msra.mxu0 %v490
        %669 = vmatprep.subr.bf16.mxu0 %v485
        %670 = vmatpush1.bf16.msra.mxu0 %v484
        %671 = vmatprep.subr.bf16.mxu0 %v479
        %672 = vmatpush1.bf16.msra.mxu0 %v478
        %673 = vmatprep.subr.bf16.mxu0 %v473
        %674 = vmatpush1.bf16.msra.mxu0 %v472
        %675 = vmatprep.subr.bf16.mxu0 %v467
        %676 = vmatpush1.bf16.msra.mxu0 %v466
        %677 = vmatprep.subr.bf16.mxu0 0
        %678 = vmatpush2.bf16.msra.mxu0 0
        %679 = vmatprep.subr.bf16.mxu0 0
        %680 = vmatpush2.bf16.msra.mxu0 0
        %681 = vmatprep.subr.bf16.mxu0 0
        %682 = vmatpush2.bf16.msra.mxu0 0
        %683 = vmatprep.subr.bf16.mxu0 0
        %684 = vmatpush2.bf16.msra.mxu0 0
        %685 = vmatprep.subr.bf16.mxu0 0
        %686 = vmatpush2.bf16.msra.mxu0 0
        %687 = vmatprep.subr.bf16.mxu0 0
        %688 = vmatpush2.bf16.msra.mxu0 0
        %689 = vmatprep.subr.bf16.mxu0 0
        %690 = vmatpush2.bf16.msra.mxu0 0
        %691 = vmatprep.subr.bf16.mxu0 0
        %692 = vmatpush2.bf16.msra.mxu0 0
        %693 = vmatprep.mubr.bf16.mxu0 0
        %694 = vmatmul.mubr.bf16.gmra.mxu0 %v578
        %v695 = vpop.f32.mrf.mxu0
        %v696 = vadd.f32 0.0, %v695
        %v697 = vpop.f32.mrf.mxu0
        %v698 = vadd.f32 0.0, %v697
        %v699 = vpop.f32.mrf.mxu0
        %v700 = vpop.f32.mrf.mxu0
        %701 = vdwg.mxu0
        %702 = vst [vmem:[%s357] sm:$0xff] %v614
        %703 = vst [vmem:[%s357 + $0x8] sm:$0xff] %v616
        %704 = vst [vmem:[%s357 + $0x10] sm:$0xff] %v655
        %705 = vst [vmem:[%s357 + $0x18] sm:$0xff] %v657
        %706 = vst [vmem:[%s357 + $0x20] sm:$0xff] %v696
        %707 = vst [vmem:[%s357 + $0x28] sm:$0xff] %v698
        %v708 = vmax.f32 %v366, %v372
        %v709 = vmax.f32 %v708, %v378
        %v710 = vmax.f32 %v709, %v384
        %v711 = vmax.f32 %v710, %v390
        %v712 = vmax.f32 %v711, %v396
        %v713 = vmax.f32 %v712, %v402
        %v714 = vmax.f32 %v713, %v408
        %v715 = vmax.f32 %v714, %v414
        %v716 = vmax.f32 %v715, %v420
        %v717 = vmax.f32 %v716, %v426
        %v718 = vmax.f32 %v717, %v432
        %v719 = vmax.f32 %v718, %v438
        %v720 = vmax.f32 %v719, %v444
        %v721 = vmax.f32 %v720, %v450
        %v722 = vmax.f32 %v721, %v456
        %v723 = vrot.slane %v722, 4
        %v724 = vmax.f32 %v722, %v723
        %v725 = vrot.slane %v724, 2
        %v726 = vmax.f32 %v724, %v725
        %v727 = vrot.slane %v726, 1
        %v728 = vmax.f32 %v726, %v727
        %v729 = vmax.f32 %v367, %v373
        %v730 = vmax.f32 %v729, %v379
        %v731 = vmax.f32 %v730, %v385
        %v732 = vmax.f32 %v731, %v391
        %v733 = vmax.f32 %v732, %v397
        %v734 = vmax.f32 %v733, %v403
        %v735 = vmax.f32 %v734, %v409
        %v736 = vmax.f32 %v735, %v415
        %v737 = vmax.f32 %v736, %v421
        %v738 = vmax.f32 %v737, %v427
        %v739 = vmax.f32 %v738, %v433
        %v740 = vmax.f32 %v739, %v439
        %v741 = vmax.f32 %v740, %v445
        %v742 = vmax.f32 %v741, %v451
        %v743 = vmax.f32 %v742, %v457
        %v744 = vrot.slane %v743, 4
        %v745 = vmax.f32 %v743, %v744
        %v746 = vrot.slane %v745, 2
        %v747 = vmax.f32 %v745, %v746
        %v748 = vrot.slane %v747, 1
        %v749 = vmax.f32 %v747, %v748
        %v750 = vmax.f32 %v368, %v374
        %v751 = vmax.f32 %v750, %v380
        %v752 = vmax.f32 %v751, %v386
        %v753 = vmax.f32 %v752, %v392
        %v754 = vmax.f32 %v753, %v398
        %v755 = vmax.f32 %v754, %v404
        %v756 = vmax.f32 %v755, %v410
        %v757 = vmax.f32 %v756, %v416
        %v758 = vmax.f32 %v757, %v422
        %v759 = vmax.f32 %v758, %v428
        %v760 = vmax.f32 %v759, %v434
        %v761 = vmax.f32 %v760, %v440
        %v762 = vmax.f32 %v761, %v446
        %v763 = vmax.f32 %v762, %v452
        %v764 = vmax.f32 %v763, %v458
        %v765 = vrot.slane %v764, 4
        %v766 = vmax.f32 %v764, %v765
        %v767 = vrot.slane %v766, 2
        %v768 = vmax.f32 %v766, %v767
        %v769 = vrot.slane %v768, 1
        %v770 = vmax.f32 %v768, %v769
        %v771 = vmax.f32 %v369, %v375
        %v772 = vmax.f32 %v771, %v381
        %v773 = vmax.f32 %v772, %v387
        %v774 = vmax.f32 %v773, %v393
        %v775 = vmax.f32 %v774, %v399
        %v776 = vmax.f32 %v775, %v405
        %v777 = vmax.f32 %v776, %v411
        %v778 = vmax.f32 %v777, %v417
        %v779 = vmax.f32 %v778, %v423
        %v780 = vmax.f32 %v779, %v429
        %v781 = vmax.f32 %v780, %v435
        %v782 = vmax.f32 %v781, %v441
        %v783 = vmax.f32 %v782, %v447
        %v784 = vmax.f32 %v783, %v453
        %v785 = vmax.f32 %v784, %v459
        %v786 = vrot.slane %v785, 4
        %v787 = vmax.f32 %v785, %v786
        %v788 = vrot.slane %v787, 2
        %v789 = vmax.f32 %v787, %v788
        %v790 = vrot.slane %v789, 1
        %v791 = vmax.f32 %v789, %v790
        %v792 = vmax.f32 %v370, %v376
        %v793 = vmax.f32 %v792, %v382
        %v794 = vmax.f32 %v793, %v388
        %v795 = vmax.f32 %v794, %v394
        %v796 = vmax.f32 %v795, %v400
        %v797 = vmax.f32 %v796, %v406
        %v798 = vmax.f32 %v797, %v412
        %v799 = vmax.f32 %v798, %v418
        %v800 = vmax.f32 %v799, %v424
        %v801 = vmax.f32 %v800, %v430
        %v802 = vmax.f32 %v801, %v436
        %v803 = vmax.f32 %v802, %v442
        %v804 = vmax.f32 %v803, %v448
        %v805 = vmax.f32 %v804, %v454
        %v806 = vmax.f32 %v805, %v460
        %v807 = vrot.slane %v806, 4
        %v808 = vmax.f32 %v806, %v807
        %v809 = vrot.slane %v808, 2
        %v810 = vmax.f32 %v808, %v809
        %v811 = vrot.slane %v810, 1
        %v812 = vmax.f32 %v810, %v811
        %v813 = vmax.f32 %v371, %v377
        %v814 = vmax.f32 %v813, %v383
        %v815 = vmax.f32 %v814, %v389
        %v816 = vmax.f32 %v815, %v395
        %v817 = vmax.f32 %v816, %v401
        %v818 = vmax.f32 %v817, %v407
        %v819 = vmax.f32 %v818, %v413
        %v820 = vmax.f32 %v819, %v419
        %v821 = vmax.f32 %v820, %v425
        %v822 = vmax.f32 %v821, %v431
        %v823 = vmax.f32 %v822, %v437
        %v824 = vmax.f32 %v823, %v443
        %v825 = vmax.f32 %v824, %v449
        %v826 = vmax.f32 %v825, %v455
        %v827 = vmax.f32 %v826, %v461
        %v828 = vrot.slane %v827, 4
        %v829 = vmax.f32 %v827, %v828
        %v830 = vrot.slane %v829, 2
        %v831 = vmax.f32 %v829, %v830
        %v832 = vrot.slane %v831, 1
        %v833 = vmax.f32 %v831, %v832
        %v834 = vsub.f32 %v366, %v728
        %v835 = vsub.f32 %v367, %v749
        %v836 = vsub.f32 %v368, %v770
        %v837 = vsub.f32 %v369, %v791
        %v838 = vsub.f32 %v370, %v812
        %v839 = vsub.f32 %v371, %v833
        %v840 = vsub.f32 %v372, %v728
        %v841 = vsub.f32 %v373, %v749
        %v842 = vsub.f32 %v374, %v770
        %v843 = vsub.f32 %v375, %v791
        %v844 = vsub.f32 %v376, %v812
        %v845 = vsub.f32 %v377, %v833
        %v846 = vsub.f32 %v378, %v728
        %v847 = vsub.f32 %v379, %v749
        %v848 = vsub.f32 %v380, %v770
        %v849 = vsub.f32 %v381, %v791
        %v850 = vsub.f32 %v382, %v812
        %v851 = vsub.f32 %v383, %v833
        %v852 = vsub.f32 %v384, %v728
        %v853 = vsub.f32 %v385, %v749
        %v854 = vsub.f32 %v386, %v770
        %v855 = vsub.f32 %v387, %v791
        %v856 = vsub.f32 %v388, %v812
        %v857 = vsub.f32 %v389, %v833
        %v858 = vsub.f32 %v390, %v728
        %v859 = vsub.f32 %v391, %v749
        %v860 = vsub.f32 %v392, %v770
        %v861 = vsub.f32 %v393, %v791
        %v862 = vsub.f32 %v394, %v812
        %v863 = vsub.f32 %v395, %v833
        %v864 = vsub.f32 %v396, %v728
        %v865 = vsub.f32 %v397, %v749
        %v866 = vsub.f32 %v398, %v770
        %v867 = vsub.f32 %v399, %v791
        %v868 = vsub.f32 %v400, %v812
        %v869 = vsub.f32 %v401, %v833
        %v870 = vsub.f32 %v402, %v728
        %v871 = vsub.f32 %v403, %v749
        %v872 = vsub.f32 %v404, %v770
        %v873 = vsub.f32 %v405, %v791
        %v874 = vsub.f32 %v406, %v812
        %v875 = vsub.f32 %v407, %v833
        %v876 = vsub.f32 %v408, %v728
        %v877 = vsub.f32 %v409, %v749
        %v878 = vsub.f32 %v410, %v770
        %v879 = vsub.f32 %v411, %v791
        %v880 = vsub.f32 %v412, %v812
        %v881 = vsub.f32 %v413, %v833
        %v882 = vsub.f32 %v414, %v728
        %v883 = vsub.f32 %v415, %v749
        %v884 = vsub.f32 %v416, %v770
        %v885 = vsub.f32 %v417, %v791
        %v886 = vsub.f32 %v418, %v812
        %v887 = vsub.f32 %v419, %v833
        %v888 = vsub.f32 %v420, %v728
        %v889 = vsub.f32 %v421, %v749
        %v890 = vsub.f32 %v422, %v770
        %v891 = vsub.f32 %v423, %v791
        %v892 = vsub.f32 %v424, %v812
        %v893 = vsub.f32 %v425, %v833
        %v894 = vsub.f32 %v426, %v728
        %v895 = vsub.f32 %v427, %v749
        %v896 = vsub.f32 %v428, %v770
        %v897 = vsub.f32 %v429, %v791
        %v898 = vsub.f32 %v430, %v812
        %v899 = vsub.f32 %v431, %v833
        %v900 = vsub.f32 %v432, %v728
        %v901 = vsub.f32 %v433, %v749
        %v902 = vsub.f32 %v434, %v770
        %v903 = vsub.f32 %v435, %v791
        %v904 = vsub.f32 %v436, %v812
        %v905 = vsub.f32 %v437, %v833
        %v906 = vsub.f32 %v438, %v728
        %v907 = vsub.f32 %v439, %v749
        %v908 = vsub.f32 %v440, %v770
        %v909 = vsub.f32 %v441, %v791
        %v910 = vsub.f32 %v442, %v812
        %v911 = vsub.f32 %v443, %v833
        %v912 = vsub.f32 %v444, %v728
        %v913 = vsub.f32 %v445, %v749
        %v914 = vsub.f32 %v446, %v770
        %v915 = vsub.f32 %v447, %v791
        %v916 = vsub.f32 %v448, %v812
        %v917 = vsub.f32 %v449, %v833
        %v918 = vsub.f32 %v450, %v728
        %v919 = vsub.f32 %v451, %v749
        %v920 = vsub.f32 %v452, %v770
        %v921 = vsub.f32 %v453, %v791
        %v922 = vsub.f32 %v454, %v812
        %v923 = vsub.f32 %v455, %v833
        %v924 = vsub.f32 %v456, %v728
        %v925 = vsub.f32 %v457, %v749
        %v926 = vsub.f32 %v458, %v770
        %v927 = vsub.f32 %v459, %v791
        %v928 = vsub.f32 %v460, %v812
        %v929 = vsub.f32 %v461, %v833
        %v930 = vpack.c.bf16 %v840, %v834
        %v931 = vpack.c.bf16 %v841, %v835
        %v932 = vpack.c.bf16 %v842, %v836
        %v933 = vpack.c.bf16 %v843, %v837
        %v934 = vpack.c.bf16 %v844, %v838
        %v935 = vpack.c.bf16 %v845, %v839
        %v936 = vpack.c.bf16 %v852, %v846
        %v937 = vpack.c.bf16 %v853, %v847
        %v938 = vpack.c.bf16 %v854, %v848
        %v939 = vpack.c.bf16 %v855, %v849
        %v940 = vpack.c.bf16 %v856, %v850
        %v941 = vpack.c.bf16 %v857, %v851
        %v942 = vpack.c.bf16 %v864, %v858
        %v943 = vpack.c.bf16 %v865, %v859
        %v944 = vpack.c.bf16 %v866, %v860
        %v945 = vpack.c.bf16 %v867, %v861
        %v946 = vpack.c.bf16 %v868, %v862
        %v947 = vpack.c.bf16 %v869, %v863
        %v948 = vpack.c.bf16 %v876, %v870
        %v949 = vpack.c.bf16 %v877, %v871
        %v950 = vpack.c.bf16 %v878, %v872
        %v951 = vpack.c.bf16 %v879, %v873
        %v952 = vpack.c.bf16 %v880, %v874
        %v953 = vpack.c.bf16 %v881, %v875
        %v954 = vpack.c.bf16 %v888, %v882
        %v955 = vpack.c.bf16 %v889, %v883
        %v956 = vpack.c.bf16 %v890, %v884
        %v957 = vpack.c.bf16 %v891, %v885
        %v958 = vpack.c.bf16 %v892, %v886
        %v959 = vpack.c.bf16 %v893, %v887
        %v960 = vpack.c.bf16 %v900, %v894
        %v961 = vpack.c.bf16 %v901, %v895
        %v962 = vpack.c.bf16 %v902, %v896
        %v963 = vpack.c.bf16 %v903, %v897
        %v964 = vpack.c.bf16 %v904, %v898
        %v965 = vpack.c.bf16 %v905, %v899
        %v966 = vpack.c.bf16 %v912, %v906
        %v967 = vpack.c.bf16 %v913, %v907
        %v968 = vpack.c.bf16 %v914, %v908
        %v969 = vpack.c.bf16 %v915, %v909
        %v970 = vpack.c.bf16 %v916, %v910
        %v971 = vpack.c.bf16 %v917, %v911
        %v972 = vpack.c.bf16 %v924, %v918
        %v973 = vpack.c.bf16 %v925, %v919
        %v974 = vpack.c.bf16 %v926, %v920
        %v975 = vpack.c.bf16 %v927, %v921
        %v976 = vpack.c.bf16 %v928, %v922
        %v977 = vpack.c.bf16 %v929, %v923
        %v979 = vmul.bf16 %v930, 1069105081
        %v980 = vpow.bf16.pop %v979
        %v982 = vmul.bf16 %v931, 1069105081
        %v983 = vpow.bf16.pop %v982
        %v985 = vmul.bf16 %v932, 1069105081
        %v986 = vpow.bf16.pop %v985
        %v988 = vmul.bf16 %v933, 1069105081
        %v989 = vpow.bf16.pop %v988
        %v991 = vmul.bf16 %v934, 1069105081
        %v992 = vpow.bf16.pop %v991
        %v994 = vmul.bf16 %v935, 1069105081
        %v995 = vpow.bf16.pop %v994
        %v997 = vmul.bf16 %v936, 1069105081
        %v998 = vpow.bf16.pop %v997
        %v1000 = vmul.bf16 %v937, 1069105081
        %v1001 = vpow.bf16.pop %v1000
        %v1003 = vmul.bf16 %v938, 1069105081
        %v1004 = vpow.bf16.pop %v1003
        %v1006 = vmul.bf16 %v939, 1069105081
        %v1007 = vpow.bf16.pop %v1006
        %v1009 = vmul.bf16 %v940, 1069105081
        %v1010 = vpow.bf16.pop %v1009
        %v1012 = vmul.bf16 %v941, 1069105081
        %v1013 = vpow.bf16.pop %v1012
        %v1015 = vmul.bf16 %v942, 1069105081
        %v1016 = vpow.bf16.pop %v1015
        %v1018 = vmul.bf16 %v943, 1069105081
        %v1019 = vpow.bf16.pop %v1018
        %v1021 = vmul.bf16 %v944, 1069105081
        %v1022 = vpow.bf16.pop %v1021
        %v1024 = vmul.bf16 %v945, 1069105081
        %v1025 = vpow.bf16.pop %v1024
        %v1027 = vmul.bf16 %v946, 1069105081
        %v1028 = vpow.bf16.pop %v1027
        %v1030 = vmul.bf16 %v947, 1069105081
        %v1031 = vpow.bf16.pop %v1030
        %v1033 = vmul.bf16 %v948, 1069105081
        %v1034 = vpow.bf16.pop %v1033
        %v1036 = vmul.bf16 %v949, 1069105081
        %v1037 = vpow.bf16.pop %v1036
        %v1039 = vmul.bf16 %v950, 1069105081
        %v1040 = vpow.bf16.pop %v1039
        %v1042 = vmul.bf16 %v951, 1069105081
        %v1043 = vpow.bf16.pop %v1042
        %v1045 = vmul.bf16 %v952, 1069105081
        %v1046 = vpow.bf16.pop %v1045
        %v1048 = vmul.bf16 %v953, 1069105081
        %v1049 = vpow.bf16.pop %v1048
        %v1051 = vmul.bf16 %v954, 1069105081
        %v1052 = vpow.bf16.pop %v1051
        %v1054 = vmul.bf16 %v955, 1069105081
        %v1055 = vpow.bf16.pop %v1054
        %v1057 = vmul.bf16 %v956, 1069105081
        %v1058 = vpow.bf16.pop %v1057
        %v1060 = vmul.bf16 %v957, 1069105081
        %v1061 = vpow.bf16.pop %v1060
        %v1063 = vmul.bf16 %v958, 1069105081
        %v1064 = vpow.bf16.pop %v1063
        %v1066 = vmul.bf16 %v959, 1069105081
        %v1067 = vpow.bf16.pop %v1066
        %v1069 = vmul.bf16 %v960, 1069105081
        %v1070 = vpow.bf16.pop %v1069
        %v1072 = vmul.bf16 %v961, 1069105081
        %v1073 = vpow.bf16.pop %v1072
        %v1075 = vmul.bf16 %v962, 1069105081
        %v1076 = vpow.bf16.pop %v1075
        %v1078 = vmul.bf16 %v963, 1069105081
        %v1079 = vpow.bf16.pop %v1078
        %v1081 = vmul.bf16 %v964, 1069105081
        %v1082 = vpow.bf16.pop %v1081
        %v1084 = vmul.bf16 %v965, 1069105081
        %v1085 = vpow.bf16.pop %v1084
        %v1087 = vmul.bf16 %v966, 1069105081
        %v1088 = vpow.bf16.pop %v1087
        %v1090 = vmul.bf16 %v967, 1069105081
        %v1091 = vpow.bf16.pop %v1090
        %v1093 = vmul.bf16 %v968, 1069105081
        %v1094 = vpow.bf16.pop %v1093
        %v1096 = vmul.bf16 %v969, 1069105081
        %v1097 = vpow.bf16.pop %v1096
        %v1099 = vmul.bf16 %v970, 1069105081
        %v1100 = vpow.bf16.pop %v1099
        %v1102 = vmul.bf16 %v971, 1069105081
        %v1103 = vpow.bf16.pop %v1102
        %v1105 = vmul.bf16 %v972, 1069105081
        %v1106 = vpow.bf16.pop %v1105
        %v1108 = vmul.bf16 %v973, 1069105081
        %v1109 = vpow.bf16.pop %v1108
        %v1111 = vmul.bf16 %v974, 1069105081
        %v1112 = vpow.bf16.pop %v1111
        %v1114 = vmul.bf16 %v975, 1069105081
        %v1115 = vpow.bf16.pop %v1114
        %v1117 = vmul.bf16 %v976, 1069105081
        %v1118 = vpow.bf16.pop %v1117
        %v1120 = vmul.bf16 %v977, 1069105081
        %v1121 = vpow.bf16.pop %v1120
        %1122 = vmatprep.subr.bf16.mxu0 %v1109
        %1123 = vmatpush1.bf16.msra.mxu0 %v1106
        %1124 = vmatprep.subr.bf16.mxu0 %v1091
        %1125 = vmatpush1.bf16.msra.mxu0 %v1088
        %1126 = vmatprep.subr.bf16.mxu0 %v1073
        %1127 = vmatpush1.bf16.msra.mxu0 %v1070
        %1128 = vmatprep.subr.bf16.mxu0 %v1055
        %1129 = vmatpush1.bf16.msra.mxu0 %v1052
        %1130 = vmatprep.subr.bf16.mxu0 %v1037
        %1131 = vmatpush1.bf16.msra.mxu0 %v1034
        %1132 = vmatprep.subr.bf16.mxu0 %v1019
        %1133 = vmatpush1.bf16.msra.mxu0 %v1016
        %1134 = vmatprep.subr.bf16.mxu0 %v1001
        %1135 = vmatpush1.bf16.msra.mxu0 %v998
        %1136 = vmatprep.subr.bf16.mxu0 %v983
        %1137 = vmatpush1.bf16.msra.mxu0 %v980
        %1138 = vmatprep.subr.bf16.mxu0 0
        %1139 = vmatpush2.bf16.msra.mxu0 0
        %1140 = vmatprep.subr.bf16.mxu0 0
        %1141 = vmatpush2.bf16.msra.mxu0 0
        %1142 = vmatprep.subr.bf16.mxu0 0
        %1143 = vmatpush2.bf16.msra.mxu0 0
        %1144 = vmatprep.subr.bf16.mxu0 0
        %1145 = vmatpush2.bf16.msra.mxu0 0
        %1146 = vmatprep.subr.bf16.mxu0 0
        %1147 = vmatpush2.bf16.msra.mxu0 0
        %1148 = vmatprep.subr.bf16.mxu0 0
        %1149 = vmatpush2.bf16.msra.mxu0 0
        %1150 = vmatprep.subr.bf16.mxu0 0
        %1151 = vmatpush2.bf16.msra.mxu0 0
        %1152 = vmatprep.subr.bf16.mxu0 0
        %1153 = vmatpush2.bf16.msra.mxu0 0
        %1154 = vmatprep.mubr.bf16.mxu0 0
        %1155 = vmatmul.mubr.bf16.gmra.mxu0 %v537
        %v1156 = vpop.f32.mrf.mxu0
        %v1157 = vadd.f32 0.0, %v1156
        %v1158 = vpop.f32.mrf.mxu0
        %v1159 = vadd.f32 0.0, %v1158
        %v1160 = vpop.f32.mrf.mxu0
        %v1161 = vpop.f32.mrf.mxu0
        %1162 = vdwg.mxu0
        %1163 = vmatprep.subr.bf16.mxu0 %v1115
        %1164 = vmatpush1.bf16.msra.mxu0 %v1112
        %1165 = vmatprep.subr.bf16.mxu0 %v1097
        %1166 = vmatpush1.bf16.msra.mxu0 %v1094
        %1167 = vmatprep.subr.bf16.mxu0 %v1079
        %1168 = vmatpush1.bf16.msra.mxu0 %v1076
        %1169 = vmatprep.subr.bf16.mxu0 %v1061
        %1170 = vmatpush1.bf16.msra.mxu0 %v1058
        %1171 = vmatprep.subr.bf16.mxu0 %v1043
        %1172 = vmatpush1.bf16.msra.mxu0 %v1040
        %1173 = vmatprep.subr.bf16.mxu0 %v1025
        %1174 = vmatpush1.bf16.msra.mxu0 %v1022
        %1175 = vmatprep.subr.bf16.mxu0 %v1007
        %1176 = vmatpush1.bf16.msra.mxu0 %v1004
        %1177 = vmatprep.subr.bf16.mxu0 %v989
        %1178 = vmatpush1.bf16.msra.mxu0 %v986
        %1179 = vmatprep.subr.bf16.mxu0 0
        %1180 = vmatpush2.bf16.msra.mxu0 0
        %1181 = vmatprep.subr.bf16.mxu0 0
        %1182 = vmatpush2.bf16.msra.mxu0 0
        %1183 = vmatprep.subr.bf16.mxu0 0
        %1184 = vmatpush2.bf16.msra.mxu0 0
        %1185 = vmatprep.subr.bf16.mxu0 0
        %1186 = vmatpush2.bf16.msra.mxu0 0
        %1187 = vmatprep.subr.bf16.mxu0 0
        %1188 = vmatpush2.bf16.msra.mxu0 0
        %1189 = vmatprep.subr.bf16.mxu0 0
        %1190 = vmatpush2.bf16.msra.mxu0 0
        %1191 = vmatprep.subr.bf16.mxu0 0
        %1192 = vmatpush2.bf16.msra.mxu0 0
        %1193 = vmatprep.subr.bf16.mxu0 0
        %1194 = vmatpush2.bf16.msra.mxu0 0
        %1195 = vmatprep.mubr.bf16.mxu0 0
        %1196 = vmatmul.mubr.bf16.gmra.mxu0 %v537
        %v1197 = vpop.f32.mrf.mxu0
        %v1198 = vadd.f32 0.0, %v1197
        %v1199 = vpop.f32.mrf.mxu0
        %v1200 = vadd.f32 0.0, %v1199
        %v1201 = vpop.f32.mrf.mxu0
        %v1202 = vpop.f32.mrf.mxu0
        %1203 = vdwg.mxu0
        %1204 = vmatprep.subr.bf16.mxu0 %v1121
        %1205 = vmatpush1.bf16.msra.mxu0 %v1118
        %1206 = vmatprep.subr.bf16.mxu0 %v1103
        %1207 = vmatpush1.bf16.msra.mxu0 %v1100
        %1208 = vmatprep.subr.bf16.mxu0 %v1085
        %1209 = vmatpush1.bf16.msra.mxu0 %v1082
        %1210 = vmatprep.subr.bf16.mxu0 %v1067
        %1211 = vmatpush1.bf16.msra.mxu0 %v1064
        %1212 = vmatprep.subr.bf16.mxu0 %v1049
        %1213 = vmatpush1.bf16.msra.mxu0 %v1046
        %1214 = vmatprep.subr.bf16.mxu0 %v1031
        %1215 = vmatpush1.bf16.msra.mxu0 %v1028
        %1216 = vmatprep.subr.bf16.mxu0 %v1013
        %1217 = vmatpush1.bf16.msra.mxu0 %v1010
        %1218 = vmatprep.subr.bf16.mxu0 %v995
        %1219 = vmatpush1.bf16.msra.mxu0 %v992
        %1220 = vmatprep.subr.bf16.mxu0 0
        %1221 = vmatpush2.bf16.msra.mxu0 0
        %1222 = vmatprep.subr.bf16.mxu0 0
        %1223 = vmatpush2.bf16.msra.mxu0 0
        %1224 = vmatprep.subr.bf16.mxu0 0
        %1225 = vmatpush2.bf16.msra.mxu0 0
        %1226 = vmatprep.subr.bf16.mxu0 0
        %1227 = vmatpush2.bf16.msra.mxu0 0
        %1228 = vmatprep.subr.bf16.mxu0 0
        %1229 = vmatpush2.bf16.msra.mxu0 0
        %1230 = vmatprep.subr.bf16.mxu0 0
        %1231 = vmatpush2.bf16.msra.mxu0 0
        %1232 = vmatprep.subr.bf16.mxu0 0
        %1233 = vmatpush2.bf16.msra.mxu0 0
        %1234 = vmatprep.subr.bf16.mxu0 0
        %1235 = vmatpush2.bf16.msra.mxu0 0
        %1236 = vmatprep.mubr.bf16.mxu0 0
        %1237 = vmatmul.mubr.bf16.gmra.mxu0 %v537
        %v1238 = vpop.f32.mrf.mxu0
        %v1239 = vadd.f32 0.0, %v1238
        %v1240 = vpop.f32.mrf.mxu0
        %v1241 = vadd.f32 0.0, %v1240
        %v1242 = vpop.f32.mrf.mxu0
        %v1243 = vpop.f32.mrf.mxu0
        %1244 = vdwg.mxu0
        %v1245 = vmax.f32 %v1157, 1e-30
        %v1246 = vmax.f32 %v1159, 1e-30
        %v1247 = vmax.f32 %v1198, 1e-30
        %v1248 = vmax.f32 %v1200, 1e-30
        %v1249 = vmax.f32 %v1239, 1e-30
        %v1250 = vmax.f32 %v1241, 1e-30
        %v1251 = vlog2.pop %v1245
        %v1252 = vmul.f32 %v1251, 0.6931472
        %v1253 = vlog2.pop %v1246
        %v1254 = vmul.f32 %v1253, 0.6931472
        %v1255 = vlog2.pop %v1247
        %v1256 = vmul.f32 %v1255, 0.6931472
        %v1257 = vlog2.pop %v1248
        %v1258 = vmul.f32 %v1257, 0.6931472
        %v1259 = vlog2.pop %v1249
        %v1260 = vmul.f32 %v1259, 0.6931472
        %v1261 = vlog2.pop %v1250
        %v1262 = vmul.f32 %v1261, 0.6931472
        %v1263 = vadd.f32 %v728, %v1252
        %v1264 = vadd.f32 %v749, %v1254
        %v1265 = vadd.f32 %v770, %v1256
        %v1266 = vadd.f32 %v791, %v1258
        %v1267 = vadd.f32 %v812, %v1260
        %v1268 = vadd.f32 %v833, %v1262
        %1269 = vst [vmem:[%s364] sm:$0xff] %v1263
        %1270 = vst [vmem:[%s364 + $0x8] sm:$0xff] %v1264
        %1271 = vst [vmem:[%s364 + $0x10] sm:$0xff] %v1265
        %1272 = vst [vmem:[%s364 + $0x18] sm:$0xff] %v1266
        %1273 = vst [vmem:[%s364 + $0x20] sm:$0xff] %v1267
        %1274 = vst [vmem:[%s364 + $0x28] sm:$0xff] %v1268
        %s1275 = sand.u32 %s144, 1
        %s1276 = scalar_lea.sflag [#allocation4], %s1275
        %s1277 = sand.u32 %s144, 1
        %s1278 = smul.addr %s1277, 48
        %s1279 = scalar_lea.vmem [#allocation10], %s1278
        %s1280 = sand.u32 %s170, 1
        %s1281 = scalar_lea.sflag [#allocation12], %s1280
        %s1282 = sand.u32 %s170, 1
        %s1283 = smul.addr %s1282, 48
        %s1284 = scalar_lea.vmem [#allocation11], %s1283
        // Predicated region
        $region53: #{tpu_custom_call.1} parent=35 // pred_check
          %p1285 = pneg %p154
        $region54: #{tpu_custom_call.1} parent=35 // pred_check_branch
          %1287 = sbr.rel (%p1285) target = $region56
        $region55: #{tpu_custom_call.1} parent=35 // pred_region
          %s1289 = ssub.s32 768, 768
          %1290 = vsyncadd %s1276, %s1289
          %s1291 = smul.addr %s32, 6
          %s1292 = smul.addr %s1291, 128
          %s1293 = scalar_lea.hbm %s4, %s1292
          %s1295 = sshll.u32 %s1279, 4
          %s1296 = int_to_ptr.vmem [resolvable:$true] %s1295
          %1298 = dma.vmem_to_hbm [thread:$0]  %s1296, 768, %s1293, %s1276
        $region56: #{tpu_custom_call.1} parent=35 // pred_fallthru
          _
        // Predicated region
        $region57: #{tpu_custom_call.1} parent=35 // pred_check
          %p1299 = pneg %p180
        $region58: #{tpu_custom_call.1} parent=35 // pred_check_branch
          %1301 = sbr.rel (%p1299) target = $region60
        $region59: #{tpu_custom_call.1} parent=35 // pred_region
          %s1303 = ssub.s32 768, 768
          %1304 = vsyncadd %s1281, %s1303
          %s1305 = smul.addr %s32, 6
          %s1306 = smul.addr %s1305, 128
          %s1307 = scalar_lea.hbm %s5, %s1306
          %s1309 = sshll.u32 %s1284, 4
          %s1310 = int_to_ptr.vmem [resolvable:$true] %s1309
          %1312 = dma.vmem_to_hbm [thread:$0]  %s1310, 768, %s1307, %s1281
        $region60: #{tpu_custom_call.1} parent=35 // pred_fallthru
          _
      $region36: #{tpu_custom_call.1} parent=5 // pred_fallthru
        _
      %p1313 = scmp.le.s32.totalorder 2, %s27
      // Predicated region
      $region61: #{tpu_custom_call.1} parent=5 // pred_check
        %p1314 = pneg %p1313
      $region62: #{tpu_custom_call.1} parent=5 // pred_check_branch
        %1316 = sbr.rel (%p1314) target = $region64
      $region63: #{tpu_custom_call.1} parent=5 // pred_region
        %s1317 = ssub.s32 %s27, 2
        // Predicated region
        $region65: #{tpu_custom_call.1} parent=63 // pred_check
          %p1318 = pneg %p160
        $region66: #{tpu_custom_call.1} parent=63 // pred_check_branch
          %1320 = sbr.rel (%p1318) target = $region68
        $region67: #{tpu_custom_call.1} parent=63 // pred_region
          %s1321 = sand.u32 %s145, 1
          %s1322 = scalar_lea.sflag [#allocation4], %s1321
          %s1323 = sand.u32 %s145, 1
          %s1324 = smul.addr %s1323, 48
          %s1325 = scalar_lea.vmem [#allocation10], %s1324
          %1326 = dma.done %s1322, 768
        $region68: #{tpu_custom_call.1} parent=63 // pred_fallthru
          _
        // Predicated region
        $region69: #{tpu_custom_call.1} parent=63 // pred_check
          %p1327 = pneg %p186
        $region70: #{tpu_custom_call.1} parent=63 // pred_check_branch
          %1329 = sbr.rel (%p1327) target = $region72
        $region71: #{tpu_custom_call.1} parent=63 // pred_region
          %s1330 = sand.u32 %s171, 1
          %s1331 = scalar_lea.sflag [#allocation12], %s1330
          %s1332 = sand.u32 %s171, 1
          %s1333 = smul.addr %s1332, 48
          %s1334 = scalar_lea.vmem [#allocation11], %s1333
          %1335 = dma.done %s1331, 768
        $region72: #{tpu_custom_call.1} parent=63 // pred_fallthru
          _
      $region64: #{tpu_custom_call.1} parent=5 // pred_fallthru
        _
    $region6: #{tpu_custom_call.1} parent=1 // loop_footer
      %s31 = sadd.s32 1, %s27
    $region7: #{tpu_custom_call.1} parent=1 // loop_footer_branch
      %26 = sbr.rel target = $region3
    $region8: #{tpu_custom_call.1} parent=1 // loop_exit
      _
    %1336 = vsyncpa [#allocation3], 1
    %s1337 = scalar_lea.sflag [#allocation3], 1
    %1338 = vsyncpa %s1337, 1
    %1339 = vsyncpa [#allocation6], 1
    %s1340 = scalar_lea.sflag [#allocation6], 1
    %1341 = vsyncpa %s1340, 1
    %1342 = vsyncpa [#allocation9], 1
    %s1343 = scalar_lea.sflag [#allocation9], 1
    %1344 = vsyncpa %s1343, 1
    %1345 = vsyncpa [#allocation4], 1
    %s1346 = scalar_lea.sflag [#allocation4], 1
    %1347 = vsyncpa %s1346, 1
    %1348 = vsyncpa [#allocation12], 1
    %s1349 = scalar_lea.sflag [#allocation12], 1
    %1350 = vsyncpa %s1349, 1

</llo_original>
